<compile_context>
chip_gen: v7x
topology: tpu7x:2x2x1
jax: 0.10.0
libtpu: 0.0.40
codegen_flags: <defaults>
</compile_context>

<pallas_src>
import functools

import jax
import jax.numpy as jnp
from jax.experimental import pallas as pl
from jax.experimental.pallas import tpu as pltpu


def _round_up(x, m):
    return (x + m - 1) // m * m


def _decoder_kernel(tok_ref, emb_ref, h0_ref, wih_ref, whh_ref, bi_ref, bhn_ref,
                    wout_ref, bout_ref, logp_ref, hout_ref, h_scr, m_scr, l_scr):
    """Grid (t, j): t = decode step, j = vocab tile.

    j == 0: ReLU(embedding row) -> single-step GRU (gate order r,z,n) updating the
            VMEM-resident hidden state, and reset of the online-softmax state.
    every j: stream one bf16 W_out^T tile, write raw logits into the resident
             (1,1,Vp) output block, update running max / sum-exp.
    last j: normalize the whole block in place (log-softmax); on the final grid
            step also write out the hidden state.
    """
    del tok_ref  # consumed by the index_maps (scalar prefetch); not needed in-body
    t = pl.program_id(0)
    j = pl.program_id(1)
    nT = pl.num_programs(0)
    nV = pl.num_programs(1)
    Hp = h_scr.shape[-1]
    Vt = wout_ref.shape[-1]

    # ---- recurrent step: once per token (first vocab tile) --------------------
    @pl.when(j == 0)
    def _recurrent_step():
        @pl.when(t == 0)
        def _():
            h_scr[...] = h0_ref[...]

        # output = F.relu(embedding(input)); row already gathered into emb_ref
        x = jnp.maximum(emb_ref[0], 0)                      # (1, Hp) bf16
        h = h_scr[...]                                      # (1, Hp) f32
        hb = h.astype(jnp.bfloat16)

        # bf16 weights, f32 accumulation.  bi = [b_ih_r+b_hh_r, b_ih_z+b_hh_z, b_ih_n]
        gi = jnp.dot(x, wih_ref[...], preferred_element_type=jnp.float32) + bi_ref[...]
        gh = jnp.dot(hb, whh_ref[...], preferred_element_type=jnp.float32)

        i_r, i_z, i_n = gi[:, 0:Hp], gi[:, Hp:2 * Hp], gi[:, 2 * Hp:3 * Hp]
        h_r, h_z, h_n = gh[:, 0:Hp], gh[:, Hp:2 * Hp], gh[:, 2 * Hp:3 * Hp]

        r = jax.nn.sigmoid(i_r + h_r)
        z = jax.nn.sigmoid(i_z + h_z)
        n = jnp.tanh(i_n + r * (h_n + bhn_ref[...]))
        h_scr[...] = (1.0 - z) * n + z * h                  # padded lanes stay 0

        # reset online-softmax running stats for this token
        m_scr[...] = jnp.full((1, 1), -jnp.inf, jnp.float32)
        l_scr[...] = jnp.zeros((1, 1), jnp.float32)

    # ---- output projection: one vocab tile per grid step ----------------------
    hb = h_scr[...].astype(jnp.bfloat16)                     # (1, Hp)
    logits = jnp.dot(hb, wout_ref[...],
                     preferred_element_type=jnp.float32) + bout_ref[...]   # (1, Vt) f32

    # stash raw logits into the VMEM-resident output block (lane-dense store)
    start = pl.multiple_of(j * Vt, Vt)
    logp_ref[:, :, pl.ds(start, Vt)] = logits.reshape(1, 1, Vt)

    # online log-sum-exp update (f32)
    m_prev = m_scr[...]                                      # (1, 1)
    m_new = jnp.maximum(m_prev, jnp.max(logits, axis=-1, keepdims=True))
    l_scr[...] = l_scr[...] * jnp.exp(m_prev - m_new) + jnp.sum(
        jnp.exp(logits - m_new), axis=-1, keepdims=True)
    m_scr[...] = m_new

    # ---- finalize: normalize the whole resident block on the last vocab tile --
    @pl.when(j == nV - 1)
    def _finalize():
        lse = m_scr[...] + jnp.log(l_scr[...])               # (1, 1)
        logp_ref[...] = logp_ref[...] - lse                  # broadcast over (1,1,Vp)

    @pl.when((t == nT - 1) & (j == nV - 1))
    def _write_hidden():
        hout_ref[...] = h_scr[...]


def prepare_params(params, *, vocab_tile=2048, lane=128):
    """One-time weight prep (hoisted out of the decode path): transpose to (in, out)
    layout, cast weights to bf16, pre-sum the r/z gate biases, and pad to
    lane-aligned blocks.  Padded vocab lanes carry a -1e30 bias so they vanish under
    log-softmax; padded hidden lanes provably stay 0 through the GRU recurrence."""
    H = params["w_hh"].shape[1]
    V = params["w_out"].shape[0]
    Hp = _round_up(H, lane)                 # == H when H % 128 == 0 (no padded lanes)
    Vt = min(_round_up(vocab_tile, lane), _round_up(V, lane))
    Vp = _round_up(V, Vt)                   # Vt | Vp by construction
    f32, bf16 = jnp.float32, jnp.bfloat16

    # (V, 1, Hp): block (1, 1, Hp) keeps the last two dims equal to the array dims.
    emb = jnp.zeros((V, 1, Hp), bf16).at[:, 0, :H].set(params["embedding"].astype(bf16))

    wih_t = jnp.zeros((Hp, 3 * Hp), bf16)
    whh_t = jnp.zeros((Hp, 3 * Hp), bf16)
    bi = jnp.zeros((1, 3 * Hp), f32)
    bhn = jnp.zeros((1, Hp), f32)
    for g in range(3):  # PyTorch GRU gate order r, z, n; one Hp-wide block each
        wih_t = wih_t.at[:H, g * Hp:g * Hp + H].set(
            params["w_ih"][g * H:(g + 1) * H, :].T.astype(bf16))
        whh_t = whh_t.at[:H, g * Hp:g * Hp + H].set(
            params["w_hh"][g * H:(g + 1) * H, :].T.astype(bf16))
        b = params["b_ih"][g * H:(g + 1) * H].astype(f32)
        if g < 2:  # pre-sum b_ih + b_hh for r and z (n keeps b_hh separate: r*(h_n+b_hn))
            b = b + params["b_hh"][g * H:(g + 1) * H].astype(f32)
        bi = bi.at[0, g * Hp:g * Hp + H].set(b)
    bhn = bhn.at[0, :H].set(params["b_hh"][2 * H:3 * H].astype(f32))

    wout_t = jnp.zeros((Hp, Vp), bf16).at[:H, :V].set(params["w_out"].T.astype(bf16))
    # padded vocab lanes get a huge negative bias so they vanish under log-softmax
    bout = jnp.full((1, Vp), -1e30, f32).at[0, :V].set(params["b_out"].astype(f32))

    prepped = {"emb": emb, "wih_t": wih_t, "whh_t": whh_t, "bi": bi, "bhn": bhn,
               "wout_t": wout_t, "bout": bout}
    cfg = {"hidden_size": H, "output_size": V, "vocab_tile": Vt}
    return prepped, cfg


@functools.partial(jax.jit, static_argnames=("hidden_size", "output_size", "vocab_tile"))
def decoder_rnn_decode(tokens, hidden, prepped, *, hidden_size, output_size, vocab_tile):
    """Teacher-forced decode of T tokens inside one pallas_call.

    tokens: (T,) int32; hidden: (1, 1, H) f32.
    Returns (log-probs (T, V) f32, final hidden (1, 1, H) f32)."""
    H, V, Vt = hidden_size, output_size, vocab_tile
    Hp, Vp = prepped["wout_t"].shape
    T = tokens.shape[0]
    nV = Vp // Vt

    toks = jnp.asarray(tokens, jnp.int32).reshape((T,))
    h0 = jnp.zeros((1, Hp), jnp.float32).at[:, :H].set(
        hidden.reshape(1, H).astype(jnp.float32))

    grid_spec = pltpu.PrefetchScalarGridSpec(
        num_scalar_prefetch=1,
        grid=(T, nV),
        in_specs=[
            pl.BlockSpec((1, 1, Hp), lambda t, j, tok: (tok[t], 0, 0)),  # emb row gather (bf16)
            pl.BlockSpec((1, Hp), lambda t, j, tok: (0, 0)),             # initial hidden (f32)
            pl.BlockSpec((Hp, 3 * Hp), lambda t, j, tok: (0, 0)),        # W_ih^T (bf16), VMEM-resident
            pl.BlockSpec((Hp, 3 * Hp), lambda t, j, tok: (0, 0)),        # W_hh^T (bf16), VMEM-resident
            pl.BlockSpec((1, 3 * Hp), lambda t, j, tok: (0, 0)),         # pre-summed gate biases (f32)
            pl.BlockSpec((1, Hp), lambda t, j, tok: (0, 0)),             # b_hh_n (f32)
            pl.BlockSpec((Hp, Vt), lambda t, j, tok: (0, j)),            # W_out^T tile (bf16), streamed
            pl.BlockSpec((1, Vt), lambda t, j, tok: (0, j)),             # b_out tile (f32)
        ],
        out_specs=(
            pl.BlockSpec((1, 1, Vp), lambda t, j, tok: (t, 0, 0)),       # log-probs, resident over j
            pl.BlockSpec((1, Hp), lambda t, j, tok: (0, 0)),             # final hidden
        ),
        scratch_shapes=[
            pltpu.VMEM((1, Hp), jnp.float32),   # hidden state, persists across all grid steps
            pltpu.VMEM((1, 1), jnp.float32),    # running max    (online log-softmax)
            pltpu.VMEM((1, 1), jnp.float32),    # running sum-exp
        ],
    )

    logp_p, h_p = pl.pallas_call(
        _decoder_kernel,
        grid_spec=grid_spec,
        out_shape=(
            jax.ShapeDtypeStruct((T, 1, Vp), jnp.float32),
            jax.ShapeDtypeStruct((1, Hp), jnp.float32),
        ),
        compiler_params=pltpu.CompilerParams(
            # both axes are sequential: axis 0 carries the GRU recurrence,
            # axis 1 carries the online-softmax running (max, sum-exp).
            dimension_semantics=("arbitrary", "arbitrary"),
            # size the vocab tile / scoped VMEM for the smallest tier (v7x: 64 MiB)
            vmem_limit_bytes=48 * 1024 * 1024,
        ),
    )(toks, prepped["emb"], h0, prepped["wih_t"], prepped["whh_t"],
      prepped["bi"], prepped["bhn"], prepped["wout_t"], prepped["bout"])

    return logp_p[:, 0, :V], h_p[:, :H].reshape(1, 1, H)


def decoder_rnn_forward(token, hidden, prepped, *, hidden_size, output_size, vocab_tile):
    """Single-step forward, exactly the PyTorch module's forward(input, hidden)."""
    tok = jnp.asarray(token, jnp.int32).reshape((1,))
    return decoder_rnn_decode(tok, hidden, prepped, hidden_size=hidden_size,
                              output_size=output_size, vocab_tile=vocab_tile)


def _reference_forward(token, hidden, params):
    """Pure-JAX reference mirroring the PyTorch module semantics, in the same mixed
    precision as the kernel (bf16 weights / matmul inputs, f32 biases & accumulation)."""
    H = params["w_hh"].shape[1]
    bf = lambda a: a.astype(jnp.bfloat16).astype(jnp.float32)
    x = jnp.maximum(bf(params["embedding"][token]).reshape(1, H), 0.0)
    h = hidden.reshape(1, H)
    hb = bf(h)
    gi = x @ bf(params["w_ih"]).T + params["b_ih"]
    gh = hb @ bf(params["w_hh"]).T + params["b_hh"]
    i_r, i_z, i_n = jnp.split(gi, 3, axis=1)
    h_r, h_z, h_n = jnp.split(gh, 3, axis=1)
    r = jax.nn.sigmoid(i_r + h_r)
    z = jax.nn.sigmoid(i_z + h_z)
    n = jnp.tanh(i_n + r * h_n)
    h_new = (1.0 - z) * n + z * h
    logits = bf(h_new) @ bf(params["w_out"]).T + params["b_out"]
    logp = jax.nn.log_softmax(logits, axis=1)
    return logp, h_new.reshape(1, 1, H)


def _reference_decode(tokens, hidden, params):
    logps, h = [], hidden
    for t in range(tokens.shape[0]):
        lp, h = _reference_forward(tokens[t], h, params)
        logps.append(lp)
    return jnp.concatenate(logps, axis=0), h


def init_params(key, hidden_size, output_size):
    ks = jax.random.split(key, 7)
    s = 1.0 / jnp.sqrt(hidden_size)
    return {
        "embedding": jax.random.normal(ks[0], (output_size, hidden_size), jnp.float32),
        "w_ih": jax.random.uniform(ks[1], (3 * hidden_size, hidden_size), jnp.float32, -s, s),
        "w_hh": jax.random.uniform(ks[2], (3 * hidden_size, hidden_size), jnp.float32, -s, s),
        "b_ih": jax.random.uniform(ks[3], (3 * hidden_size,), jnp.float32, -s, s),
        "b_hh": jax.random.uniform(ks[4], (3 * hidden_size,), jnp.float32, -s, s),
        "w_out": jax.random.uniform(ks[5], (output_size, hidden_size), jnp.float32, -s, s),
        "b_out": jax.random.uniform(ks[6], (output_size,), jnp.float32, -s, s),
    }


if __name__ == "__main__":
    hidden_size = 32
    output_size = 500   # not a multiple of 128 -> exercises the padded-vocab path
    vocab_tile = 128    # small tile so the demo streams 4 W_out tiles per token

    key = jax.random.PRNGKey(0)
    params = init_params(key, hidden_size, output_size)
    prepped, cfg = prepare_params(params, vocab_tile=vocab_tile)

    # --- single-step forward: exactly the PyTorch module's forward() ----------
    token = jnp.array(5, dtype=jnp.int32)
    hidden = jnp.zeros((1, 1, hidden_size), jnp.float32)     # initHidden()
    logp, h1 = decoder_rnn_forward(token, hidden, prepped, **cfg)
    jax.block_until_ready((logp, h1))

    ref_lp, ref_h = _reference_forward(token, hidden, params)
    assert logp.shape == (1, output_size) and h1.shape == (1, 1, hidden_size)
    assert jnp.allclose(logp, ref_lp, atol=1e-3, rtol=1e-3)
    assert jnp.allclose(h1, ref_h, atol=1e-3, rtol=1e-3)

    # --- multi-step teacher-forced decode: the whole loop inside one pallas_call
    tokens = jnp.array([5, 499, 42, 7], dtype=jnp.int32)
    logps, hT = decoder_rnn_decode(tokens, hidden, prepped, **cfg)
    jax.block_until_ready((logps, hT))

    ref_lps, ref_hT = _reference_decode(tokens, hidden, params)
    assert logps.shape == (tokens.shape[0], output_size)
    # looser tolerance: the evolving hidden state is re-cast to bf16 each step and a
    # single bf16-ulp rounding difference vs. the reference can amplify slightly.
    assert jnp.allclose(logps, ref_lps, atol=5e-3, rtol=5e-3)
    assert jnp.allclose(hT, ref_hT, atol=5e-3, rtol=5e-3)

    print("KERNEL_OK")
</pallas_src>

<mosaic_0001>
module attributes {stable_mosaic.version = 11 : i64} {
  func.func @_decoder_kernel(%arg0: i32, %arg1: i32, %arg2: memref<1xi32, #tpu.memory_space<smem>>, %arg3: memref<1x1x128xbf16, #tpu.memory_space<vmem>>, %arg4: memref<1x128xf32, #tpu.memory_space<vmem>>, %arg5: memref<128x384xbf16, #tpu.memory_space<vmem>>, %arg6: memref<128x384xbf16, #tpu.memory_space<vmem>>, %arg7: memref<1x384xf32, #tpu.memory_space<vmem>>, %arg8: memref<1x128xf32, #tpu.memory_space<vmem>>, %arg9: memref<128x128xbf16, #tpu.memory_space<vmem>>, %arg10: memref<1x128xf32, #tpu.memory_space<vmem>>, %arg11: memref<1x1x512xf32, #tpu.memory_space<vmem>>, %arg12: memref<1x128xf32, #tpu.memory_space<vmem>>, %arg13: memref<1x128xf32, #tpu.memory_space<vmem>>, %arg14: memref<1x1xf32, #tpu.memory_space<vmem>>, %arg15: memref<1x1xf32, #tpu.memory_space<vmem>>) attributes {dimension_semantics = [#tpu.dimension_semantics<arbitrary>, #tpu.dimension_semantics<arbitrary>], iteration_bounds = array<i64: 1, 4>, scalar_prefetch = 1 : i64, scratch_operands = 3 : i64, tpu.core_type = #tpu.core_type<tc>, window_params = [{transform_indices = @transform_0, window_bounds = array<i64: 1, 1, 128>}, {pipeline_mode = #tpu.pipeline_mode<synchronous>, transform_indices = @transform_1, window_bounds = array<i64: 1, 128>}, {pipeline_mode = #tpu.pipeline_mode<synchronous>, transform_indices = @transform_2, window_bounds = array<i64: 128, 384>}, {pipeline_mode = #tpu.pipeline_mode<synchronous>, transform_indices = @transform_3, window_bounds = array<i64: 128, 384>}, {pipeline_mode = #tpu.pipeline_mode<synchronous>, transform_indices = @transform_4, window_bounds = array<i64: 1, 384>}, {pipeline_mode = #tpu.pipeline_mode<synchronous>, transform_indices = @transform_5, window_bounds = array<i64: 1, 128>}, {transform_indices = @transform_6, window_bounds = array<i64: 128, 128>}, {transform_indices = @transform_7, window_bounds = array<i64: 1, 128>}, {transform_indices = @transform_8, window_bounds = array<i64: 1, 1, 512>}, {pipeline_mode = #tpu.pipeline_mode<synchronous>, transform_indices = @transform_9, window_bounds = array<i64: 1, 128>}]} {
    %c0_i32 = arith.constant 0 : i32
    %0 = arith.cmpi eq, %arg1, %c0_i32 : i32
    %1 = arith.extui %0 : i1 to i32
    %c0_i32_0 = arith.constant 0 : i32
    %2 = arith.cmpi ne, %1, %c0_i32_0 : i32
    scf.if %2 {
      %c0_i32_22 = arith.constant 0 : i32
      %38 = arith.cmpi eq, %arg0, %c0_i32_22 : i32
      %39 = arith.extui %38 : i1 to i32
      %c0_i32_23 = arith.constant 0 : i32
      %40 = arith.cmpi ne, %39, %c0_i32_23 : i32
      scf.if %40 {
        %c0_51 = arith.constant 0 : index
        %c0_52 = arith.constant 0 : index
        %86 = vector.load %arg4[%c0_51, %c0_52] : memref<1x128xf32, #tpu.memory_space<vmem>>, vector<1x128xf32>
        %c0_53 = arith.constant 0 : index
        %c0_54 = arith.constant 0 : index
        %87 = vector.load %arg13[%c0_53, %c0_54] : memref<1x128xf32, #tpu.memory_space<vmem>>, vector<1x128xf32>
        tpu.vector_store %arg13[%c0_53, %c0_54], %86 {strides = array<i32>} : memref<1x128xf32, #tpu.memory_space<vmem>>, vector<1x128xf32>,
      } else {
      }
      %c0_24 = arith.constant 0 : index
      %c0_25 = arith.constant 0 : index
      %c0_26 = arith.constant 0 : index
      %41 = vector.load %arg3[%c0_24, %c0_25, %c0_26] : memref<1x1x128xbf16, #tpu.memory_space<vmem>>, vector<1x1x128xbf16>
      %42 = vector.shape_cast %41 : vector<1x1x128xbf16> to vector<1x128xbf16>
      %cst_27 = arith.constant 0.000000e+00 : bf16
      %43 = vector.broadcast %cst_27 : bf16 to vector<1x128xbf16>
      %44 = arith.maximumf %42, %43 : vector<1x128xbf16>
      %c0_28 = arith.constant 0 : index
      %c0_29 = arith.constant 0 : index
      %45 = vector.load %arg13[%c0_28, %c0_29] : memref<1x128xf32, #tpu.memory_space<vmem>>, vector<1x128xf32>
      %46 = arith.truncf %45 : vector<1x128xf32> to vector<1x128xbf16>
      %c0_30 = arith.constant 0 : index
      %c0_31 = arith.constant 0 : index
      %47 = vector.load %arg5[%c0_30, %c0_31] : memref<128x384xbf16, #tpu.memory_space<vmem>>, vector<128x384xbf16>
      %cst_32 = arith.constant dense<0.000000e+00> : vector<1x384xf32>
      %48 = tpu.matmul %44, %47, %cst_32 {dimension_numbers = #tpu.dot_dimension_numbers<[1], [0], [0], [1], [0, 0, 1, 1], [], []>} : vector<1x128xbf16>, vector<128x384xbf16>, vector<1x384xf32> -> vector<1x384xf32>
      %c0_33 = arith.constant 0 : index
      %c0_34 = arith.constant 0 : index
      %49 = vector.load %arg7[%c0_33, %c0_34] : memref<1x384xf32, #tpu.memory_space<vmem>>, vector<1x384xf32>
      %50 = arith.addf %48, %49 : vector<1x384xf32>
      %c0_35 = arith.constant 0 : index
      %c0_36 = arith.constant 0 : index
      %51 = vector.load %arg6[%c0_35, %c0_36] : memref<128x384xbf16, #tpu.memory_space<vmem>>, vector<128x384xbf16>
      %cst_37 = arith.constant dense<0.000000e+00> : vector<1x384xf32>
      %52 = tpu.matmul %46, %51, %cst_37 {dimension_numbers = #tpu.dot_dimension_numbers<[1], [0], [0], [1], [0, 0, 1, 1], [], []>} : vector<1x128xbf16>, vector<128x384xbf16>, vector<1x384xf32> -> vector<1x384xf32>
      %53 = vector.extract_strided_slice %50 {offsets = [0, 0], sizes = [1, 128], strides = [1, 1]} : vector<1x384xf32> to vector<1x128xf32>
      %54 = vector.extract_strided_slice %50 {offsets = [0, 128], sizes = [1, 128], strides = [1, 1]} : vector<1x384xf32> to vector<1x128xf32>
      %55 = vector.extract_strided_slice %50 {offsets = [0, 256], sizes = [1, 128], strides = [1, 1]} : vector<1x384xf32> to vector<1x128xf32>
      %56 = vector.extract_strided_slice %52 {offsets = [0, 0], sizes = [1, 128], strides = [1, 1]} : vector<1x384xf32> to vector<1x128xf32>
      %57 = vector.extract_strided_slice %52 {offsets = [0, 128], sizes = [1, 128], strides = [1, 1]} : vector<1x384xf32> to vector<1x128xf32>
      %58 = vector.extract_strided_slice %52 {offsets = [0, 256], sizes = [1, 128], strides = [1, 1]} : vector<1x384xf32> to vector<1x128xf32>
      %59 = arith.addf %53, %56 : vector<1x128xf32>
      %60 = arith.negf %59 : vector<1x128xf32>
      %61 = math.exp %60 : vector<1x128xf32>
      %cst_38 = arith.constant 1.000000e+00 : f32
      %62 = vector.broadcast %cst_38 : f32 to vector<1x128xf32>
      %63 = arith.addf %62, %61 : vector<1x128xf32>
      %64 = arith.divf %62, %63 : vector<1x128xf32>
      %65 = arith.addf %54, %57 : vector<1x128xf32>
      %66 = arith.negf %65 : vector<1x128xf32>
      %67 = math.exp %66 : vector<1x128xf32>
      %cst_39 = arith.constant 1.000000e+00 : f32
      %68 = vector.broadcast %cst_39 : f32 to vector<1x128xf32>
      %69 = arith.addf %68, %67 : vector<1x128xf32>
      %70 = arith.divf %68, %69 : vector<1x128xf32>
      %c0_40 = arith.constant 0 : index
      %c0_41 = arith.constant 0 : index
      %71 = vector.load %arg8[%c0_40, %c0_41] : memref<1x128xf32, #tpu.memory_space<vmem>>, vector<1x128xf32>
      %72 = arith.addf %58, %71 : vector<1x128xf32>
      %73 = arith.mulf %64, %72 : vector<1x128xf32>
      %74 = arith.addf %55, %73 : vector<1x128xf32>
      %75 = math.tanh %74 : vector<1x128xf32>
      %cst_42 = arith.constant 1.000000e+00 : f32
      %76 = vector.broadcast %cst_42 : f32 to vector<1x128xf32>
      %77 = arith.subf %76, %70 : vector<1x128xf32>
      %78 = arith.mulf %77, %75 : vector<1x128xf32>
      %79 = arith.mulf %70, %45 : vector<1x128xf32>
      %80 = arith.addf %78, %79 : vector<1x128xf32>
      %c0_43 = arith.constant 0 : index
      %c0_44 = arith.constant 0 : index
      %81 = vector.load %arg13[%c0_43, %c0_44] : memref<1x128xf32, #tpu.memory_space<vmem>>, vector<1x128xf32>
      tpu.vector_store %arg13[%c0_43, %c0_44], %80 {strides = array<i32>} : memref<1x128xf32, #tpu.memory_space<vmem>>, vector<1x128xf32>,
      %cst_45 = arith.constant 0xFF800000 : f32
      %82 = vector.broadcast %cst_45 : f32 to vector<1x1xf32>
      %c0_46 = arith.constant 0 : index
      %c0_47 = arith.constant 0 : index
      %83 = vector.load %arg14[%c0_46, %c0_47] : memref<1x1xf32, #tpu.memory_space<vmem>>, vector<1x1xf32>
      tpu.vector_store %arg14[%c0_46, %c0_47], %82 {strides = array<i32>} : memref<1x1xf32, #tpu.memory_space<vmem>>, vector<1x1xf32>,
      %cst_48 = arith.constant 0.000000e+00 : f32
      %84 = vector.broadcast %cst_48 : f32 to vector<1x1xf32>
      %c0_49 = arith.constant 0 : index
      %c0_50 = arith.constant 0 : index
      %85 = vector.load %arg15[%c0_49, %c0_50] : memref<1x1xf32, #tpu.memory_space<vmem>>, vector<1x1xf32>
      tpu.vector_store %arg15[%c0_49, %c0_50], %84 {strides = array<i32>} : memref<1x1xf32, #tpu.memory_space<vmem>>, vector<1x1xf32>,
    } else {
    }
    %c0 = arith.constant 0 : index
    %c0_1 = arith.constant 0 : index
    %3 = vector.load %arg13[%c0, %c0_1] : memref<1x128xf32, #tpu.memory_space<vmem>>, vector<1x128xf32>
    %4 = arith.truncf %3 : vector<1x128xf32> to vector<1x128xbf16>
    %c0_2 = arith.constant 0 : index
    %c0_3 = arith.constant 0 : index
    %5 = vector.load %arg9[%c0_2, %c0_3] : memref<128x128xbf16, #tpu.memory_space<vmem>>, vector<128x128xbf16>
    %cst = arith.constant dense<0.000000e+00> : vector<1x128xf32>
    %6 = tpu.matmul %4, %5, %cst {dimension_numbers = #tpu.dot_dimension_numbers<[1], [0], [0], [1], [0, 0, 1, 1], [], []>} : vector<1x128xbf16>, vector<128x128xbf16>, vector<1x128xf32> -> vector<1x128xf32>
    %c0_4 = arith.constant 0 : index
    %c0_5 = arith.constant 0 : index
    %7 = vector.load %arg10[%c0_4, %c0_5] : memref<1x128xf32, #tpu.memory_space<vmem>>, vector<1x128xf32>
    %8 = arith.addf %6, %7 : vector<1x128xf32>
    %c128_i32 = arith.constant 128 : i32
    %9 = arith.muli %arg1, %c128_i32 : i32
    %10 = tpu.assume_multiple %9, 128 : i32
    %11 = vector.shape_cast %8 : vector<1x128xf32> to vector<1x1x128xf32>
    %c0_6 = arith.constant 0 : index
    %c0_7 = arith.constant 0 : index
    %12 = arith.index_cast %10 : i32 to index
    %13 = vector.load %arg11[%c0_6, %c0_7, %12] : memref<1x1x512xf32, #tpu.memory_space<vmem>>, vector<1x1x128xf32>
    tpu.vector_store %arg11[%c0_6, %c0_7, %12], %11 {strides = array<i32>} : memref<1x1x512xf32, #tpu.memory_space<vmem>>, vector<1x1x128xf32>,
    %c0_8 = arith.constant 0 : index
    %c0_9 = arith.constant 0 : index
    %14 = vector.load %arg14[%c0_8, %c0_9] : memref<1x1xf32, #tpu.memory_space<vmem>>, vector<1x1xf32>
    %cst_10 = arith.constant dense<0xFF800000> : vector<1xf32>
    %15 = vector.multi_reduction <maximumf>, %8, %cst_10 [1] : vector<1x128xf32> to vector<1xf32>
    %16 = vector.shape_cast %15 : vector<1xf32> to vector<1x1xf32>
    %17 = arith.maximumf %14, %16 : vector<1x1xf32>
    %c0_11 = arith.constant 0 : index
    %c0_12 = arith.constant 0 : index
    %18 = vector.load %arg15[%c0_11, %c0_12] : memref<1x1xf32, #tpu.memory_space<vmem>>, vector<1x1xf32>
    %19 = arith.subf %14, %17 : vector<1x1xf32>
    %20 = math.exp %19 : vector<1x1xf32>
    %21 = arith.mulf %18, %20 : vector<1x1xf32>
    %22 = vector.broadcast %17 : vector<1x1xf32> to vector<1x128xf32>
    %23 = arith.subf %8, %22 : vector<1x128xf32>
    %24 = math.exp %23 : vector<1x128xf32>
    %cst_13 = arith.constant dense<0.000000e+00> : vector<1xf32>
    %25 = vector.multi_reduction <add>, %24, %cst_13 [1] : vector<1x128xf32> to vector<1xf32>
    %26 = vector.shape_cast %25 : vector<1xf32> to vector<1x1xf32>
    %27 = arith.addf %21, %26 : vector<1x1xf32>
    %c0_14 = arith.constant 0 : index
    %c0_15 = arith.constant 0 : index
    %28 = vector.load %arg15[%c0_14, %c0_15] : memref<1x1xf32, #tpu.memory_space<vmem>>, vector<1x1xf32>
    tpu.vector_store %arg15[%c0_14, %c0_15], %27 {strides = array<i32>} : memref<1x1xf32, #tpu.memory_space<vmem>>, vector<1x1xf32>,
    %c0_16 = arith.constant 0 : index
    %c0_17 = arith.constant 0 : index
    %29 = vector.load %arg14[%c0_16, %c0_17] : memref<1x1xf32, #tpu.memory_space<vmem>>, vector<1x1xf32>
    tpu.vector_store %arg14[%c0_16, %c0_17], %17 {strides = array<i32>} : memref<1x1xf32, #tpu.memory_space<vmem>>, vector<1x1xf32>,
    %c3_i32 = arith.constant 3 : i32
    %30 = arith.cmpi eq, %arg1, %c3_i32 : i32
    %31 = arith.extui %30 : i1 to i32
    %c0_i32_18 = arith.constant 0 : i32
    %32 = arith.cmpi ne, %31, %c0_i32_18 : i32
    scf.if %32 {
      %c0_22 = arith.constant 0 : index
      %c0_23 = arith.constant 0 : index
      %38 = vector.load %arg14[%c0_22, %c0_23] : memref<1x1xf32, #tpu.memory_space<vmem>>, vector<1x1xf32>
      %c0_24 = arith.constant 0 : index
      %c0_25 = arith.constant 0 : index
      %39 = vector.load %arg15[%c0_24, %c0_25] : memref<1x1xf32, #tpu.memory_space<vmem>>, vector<1x1xf32>
      %40 = math.log %39 : vector<1x1xf32>
      %41 = arith.addf %38, %40 : vector<1x1xf32>
      %c0_26 = arith.constant 0 : index
      %c0_27 = arith.constant 0 : index
      %c0_28 = arith.constant 0 : index
      %42 = vector.load %arg11[%c0_26, %c0_27, %c0_28] : memref<1x1x512xf32, #tpu.memory_space<vmem>>, vector<1x1x512xf32>
      %43 = vector.shape_cast %41 : vector<1x1xf32> to vector<1x1x1xf32>
      %44 = vector.broadcast %43 : vector<1x1x1xf32> to vector<1x1x512xf32>
      %45 = arith.subf %42, %44 : vector<1x1x512xf32>
      %c0_29 = arith.constant 0 : index
      %c0_30 = arith.constant 0 : index
      %c0_31 = arith.constant 0 : index
      %46 = vector.load %arg11[%c0_29, %c0_30, %c0_31] : memref<1x1x512xf32, #tpu.memory_space<vmem>>, vector<1x1x512xf32>
      tpu.vector_store %arg11[%c0_29, %c0_30, %c0_31], %45 {strides = array<i32>} : memref<1x1x512xf32, #tpu.memory_space<vmem>>, vector<1x1x512xf32>,
    } else {
    }
    %c0_i32_19 = arith.constant 0 : i32
    %33 = arith.cmpi eq, %arg0, %c0_i32_19 : i32
    %c3_i32_20 = arith.constant 3 : i32
    %34 = arith.cmpi eq, %arg1, %c3_i32_20 : i32
    %35 = arith.andi %33, %34 : i1
    %36 = arith.extui %35 : i1 to i32
    %c0_i32_21 = arith.constant 0 : i32
    %37 = arith.cmpi ne, %36, %c0_i32_21 : i32
    scf.if %37 {
      %c0_22 = arith.constant 0 : index
      %c0_23 = arith.constant 0 : index
      %38 = vector.load %arg13[%c0_22, %c0_23] : memref<1x128xf32, #tpu.memory_space<vmem>>, vector<1x128xf32>
      %c0_24 = arith.constant 0 : index
      %c0_25 = arith.constant 0 : index
      %39 = vector.load %arg12[%c0_24, %c0_25] : memref<1x128xf32, #tpu.memory_space<vmem>>, vector<1x128xf32>
      tpu.vector_store %arg12[%c0_24, %c0_25], %38 {strides = array<i32>} : memref<1x128xf32, #tpu.memory_space<vmem>>, vector<1x128xf32>,
    } else {
    }
    return
  }
  func.func @transform_0(%arg0: i32, %arg1: i32, %arg2: memref<1xi32, #tpu.memory_space<smem>>) -> (i32, i32, i32) {
    %0 = arith.index_cast %arg0 : i32 to index
    %1 = memref.load %arg2[%0] : memref<1xi32, #tpu.memory_space<smem>>
    %c0_i32 = arith.constant 0 : i32
    %c0_i32_0 = arith.constant 0 : i32
    %c0_i32_1 = arith.constant 0 : i32
    return %1, %c0_i32, %c0_i32_0 : i32, i32, i32
  }
  func.func @transform_1(%arg0: i32, %arg1: i32, %arg2: memref<1xi32, #tpu.memory_space<smem>>) -> (i32, i32) {
    %c0_i32 = arith.constant 0 : i32
    %c0_i32_0 = arith.constant 0 : i32
    %c0_i32_1 = arith.constant 0 : i32
    return %c0_i32, %c0_i32_0 : i32, i32
  }
  func.func @transform_2(%arg0: i32, %arg1: i32, %arg2: memref<1xi32, #tpu.memory_space<smem>>) -> (i32, i32) {
    %c0_i32 = arith.constant 0 : i32
    %c0_i32_0 = arith.constant 0 : i32
    %c0_i32_1 = arith.constant 0 : i32
    return %c0_i32, %c0_i32_0 : i32, i32
  }
  func.func @transform_3(%arg0: i32, %arg1: i32, %arg2: memref<1xi32, #tpu.memory_space<smem>>) -> (i32, i32) {
    %c0_i32 = arith.constant 0 : i32
    %c0_i32_0 = arith.constant 0 : i32
    %c0_i32_1 = arith.constant 0 : i32
    return %c0_i32, %c0_i32_0 : i32, i32
  }
  func.func @transform_4(%arg0: i32, %arg1: i32, %arg2: memref<1xi32, #tpu.memory_space<smem>>) -> (i32, i32) {
    %c0_i32 = arith.constant 0 : i32
    %c0_i32_0 = arith.constant 0 : i32
    %c0_i32_1 = arith.constant 0 : i32
    return %c0_i32, %c0_i32_0 : i32, i32
  }
  func.func @transform_5(%arg0: i32, %arg1: i32, %arg2: memref<1xi32, #tpu.memory_space<smem>>) -> (i32, i32) {
    %c0_i32 = arith.constant 0 : i32
    %c0_i32_0 = arith.constant 0 : i32
    %c0_i32_1 = arith.constant 0 : i32
    return %c0_i32, %c0_i32_0 : i32, i32
  }
  func.func @transform_6(%arg0: i32, %arg1: i32, %arg2: memref<1xi32, #tpu.memory_space<smem>>) -> (i32, i32) {
    %c0_i32 = arith.constant 0 : i32
    %c0_i32_0 = arith.constant 0 : i32
    return %c0_i32, %arg1 : i32, i32
  }
  func.func @transform_7(%arg0: i32, %arg1: i32, %arg2: memref<1xi32, #tpu.memory_space<smem>>) -> (i32, i32) {
    %c0_i32 = arith.constant 0 : i32
    %c0_i32_0 = arith.constant 0 : i32
    return %c0_i32, %arg1 : i32, i32
  }
  func.func @transform_8(%arg0: i32, %arg1: i32, %arg2: memref<1xi32, #tpu.memory_space<smem>>) -> (i32, i32, i32) {
    %c0_i32 = arith.constant 0 : i32
    %c0_i32_0 = arith.constant 0 : i32
    %c0_i32_1 = arith.constant 0 : i32
    return %arg0, %c0_i32, %c0_i32_0 : i32, i32, i32
  }
  func.func @transform_9(%arg0: i32, %arg1: i32, %arg2: memref<1xi32, #tpu.memory_space<smem>>) -> (i32, i32) {
    %c0_i32 = arith.constant 0 : i32
    %c0_i32_0 = arith.constant 0 : i32
    %c0_i32_1 = arith.constant 0 : i32
    return %c0_i32, %c0_i32_0 : i32, i32
  }
}

</mosaic_0001>

<llo_original>
// kernel: decoder_rnn_decode.1
$region0: #{decoder_rnn_decode.1}
  #allocation0 [shape = 'u32[]', space=smem, size = 0x4, offset = 0x4, fixed_abs, tag = 'smem constant byte address 0x4 - core index']
  #allocation1 [shape = 'u32[144,128]{1,0:T(1,128)}', space=vmem, size = 0x12000, scoped, tag = 'internal scratch']
  #allocation2 [shape = 'f32[1,128]{1,0:T(1,128)}', space=vmem, size = 0x200, scoped, tag = 'scratch operand']
  #allocation3 [shape = 'f32[1,1]{1,0:T(1,128)}', space=vmem, size = 0x200, scoped, tag = 'scratch operand']
  #allocation4 [shape = 'f32[1,1]{1,0:T(1,128)}', space=vmem, size = 0x200, scoped, tag = 'scratch operand']
  #allocation5 [shape = 's32[1]{0}', space=sflag, size = 0x4, scoped, tag = 'scoped memory for decoder_rnn_decode.1']
  #allocation6 [shape = 's32[1]{0:T(128)S(6)}', space=smem, size = 0x200, scoped, tag = 'prefetched SMEM operand 0']
  %s0 = inlined_call_operand.<no memory space> [shape: s32[1], index: 0, kind: input, shape index: {}]
  %s1 = inlined_call_operand.vmem [shape: bf16[500,1,128], index: 1, kind: input, shape index: {}]
  %s2 = inlined_call_operand.vmem [shape: f32[1,128], index: 2, kind: input, shape index: {}]
  %s3 = inlined_call_operand.vmem [shape: bf16[128,384], index: 3, kind: input, shape index: {}]
  %s4 = inlined_call_operand.vmem [shape: bf16[128,384], index: 4, kind: input, shape index: {}]
  %s5 = inlined_call_operand.vmem [shape: f32[1,384], index: 5, kind: input, shape index: {}]
  %s6 = inlined_call_operand.vmem [shape: f32[1,128], index: 6, kind: input, shape index: {}]
  %s7 = inlined_call_operand.vmem [shape: bf16[128,512], index: 7, kind: input, shape index: {}]
  %s8 = inlined_call_operand.vmem [shape: f32[1,512], index: 8, kind: input, shape index: {}]
  %s9 = inlined_call_operand.vmem [shape: f32[1,1,512], index: 9, kind: output, shape index: {0}]
  %s10 = inlined_call_operand.vmem [shape: f32[1,128], index: 10, kind: output, shape index: {1}]
  %11 = xla_tuple %s9, %s10
  %s12 = sld [smem:[#allocation0]]
  $region130: #{decoder_rnn_decode.1} parent=0
    _
  %s14 = ssub.s32 1, %s12
  %s15 = scalar_select 0, %s14, %s12
  %16 = sst [smem:[#allocation6]] %s0
  $region1: #{decoder_rnn_decode.1} parent=0
    #allocation7 [shape = 'u8[65536]{0}', space=vmem, size = 0x10000, scoped, tag = 'input window, operand 7']
    loop: start=0, step=1, limit=6
    $region2: #{decoder_rnn_decode.1} parent=1 // loop_pre_header
      _
    $region3: #{decoder_rnn_decode.1} parent=1 // loop_header
      %s18 = sphi 0, %s22
      %p19 = scmp.ge.s32.totalorder %s18, 6
      %s25 = sphi 0, %s37
      %s26 = sphi 0, %s33
      %s27 = sphi 0, %s25
      %s28 = sphi 0, %s26
      %s29 = sphi 0, %s27
      %s30 = sphi 0, %s28
      %s42 = sphi 0, %s44
      %s45 = sphi 0, %s42
      %s46 = sphi 0, %s45
      %s62 = sphi 0, %s46
      %s66 = sphi 0, %s66
      %s68 = sphi 0, %s66
      %s69 = sphi 0, %s68
      %s83 = sphi 0, %s69
      %s87 = sphi 0, %s87
      %s89 = sphi 0, %s87
      %s90 = sphi 0, %s89
      %s104 = sphi 0, %s90
      %s108 = sphi 0, %s108
      %s110 = sphi 0, %s108
      %s111 = sphi 0, %s110
      %s125 = sphi 0, %s111
      %s129 = sphi 0, %s129
      %s131 = sphi 0, %s129
      %s132 = sphi 0, %s131
      %s146 = sphi 0, %s132
      %s150 = sphi 0, %s150
      %s152 = sphi 0, %s150
      %s153 = sphi 0, %s152
      %s167 = sphi 0, %s153
      %s173 = sphi 0, %s175
      %s176 = sphi 0, %s173
      %s177 = sphi 0, %s176
      %s193 = sphi 0, %s177
      %s199 = sphi 0, %s201
      %s202 = sphi 0, %s199
      %s203 = sphi 0, %s202
      %s219 = sphi 0, %s203
      %s225 = sphi 0, %s227
      %s228 = sphi 0, %s225
      %s229 = sphi 0, %s228
      %s245 = sphi 0, %s229
      %s249 = sphi 0, %s249
      %s251 = sphi 0, %s249
      %s252 = sphi 0, %s251
      %s266 = sphi 0, %s252
    $region4: #{decoder_rnn_decode.1} parent=1 // loop_header_branch
      %21 = sbr.rel (%p19) target = $region8
    $region5: #{decoder_rnn_decode.1} parent=1 // loop_body
      %s23 = ssub.s32 %s18, 1
      %s24 = ssub.s32 %s18, 2
      %s31 = sadd.s32 1, %s26
      %p32 = scmp.ge.s32.totalorder %s31, 4
      %s33 = scalar_select %p32, 0, %s31
      %s34 = sadd.s32 1, %s25
      %s35 = scalar_select %p32, %s34, %s25
      %p36 = scmp.ge.s32.totalorder %s35, 1
      %s37 = scalar_select %p36, 0, %s35
      %s38 = sld [smem:[#allocation6 + %s25]]
      %s39 = sld [smem:[#allocation6 + %s37]]
      %s40 = ssub.s32 %s38, %s39
      %p41 = scmp.eq.s32.totalorder %s40, 0
      %s43 = sadd.s32 %s42, 1
      %s44 = scalar_select %p41, %s42, %s43
      %p47 = pneg %p41
      %p48 = scmp.eq.s32.totalorder %s18, 3
      %p49 = por %p47, %p48
      %p50 = scmp.ne.s32.totalorder %s42, %s45
      %p51 = scmp.eq.s32.totalorder %s18, 0
      %p52 = por %p50, %p51
      %p53 = scmp.ne.s32.totalorder %s42, %s45
      %p54 = scmp.eq.s32.totalorder %s23, 3
      %p55 = por %p53, %p54
      %p56 = scmp.ne.s32.totalorder %s45, %s46
      %p57 = scmp.eq.s32.totalorder %s23, 0
      %p58 = por %p56, %p57
      %p59 = scmp.ne.s32.totalorder %s45, %s46
      %p60 = scmp.eq.s32.totalorder %s24, 3
      %p61 = por %p59, %p60
      %p63 = scmp.ne.s32.totalorder %s46, %s62
      %p64 = scmp.eq.s32.totalorder %s24, 0
      %p65 = por %p63, %p64
      %s67 = sadd.s32 %s66, 1
      %p70 = scmp.eq.s32.totalorder %s18, 3
      %p71 = scmp.ne.s32.totalorder %s66, %s68
      %p72 = scmp.eq.s32.totalorder %s18, 0
      %p73 = por %p71, %p72
      %p74 = scmp.ne.s32.totalorder %s66, %s68
      %p75 = scmp.eq.s32.totalorder %s23, 3
      %p76 = por %p74, %p75
      %p77 = scmp.ne.s32.totalorder %s68, %s69
      %p78 = scmp.eq.s32.totalorder %s23, 0
      %p79 = por %p77, %p78
      %p80 = scmp.ne.s32.totalorder %s68, %s69
      %p81 = scmp.eq.s32.totalorder %s24, 3
      %p82 = por %p80, %p81
      %p84 = scmp.ne.s32.totalorder %s69, %s83
      %p85 = scmp.eq.s32.totalorder %s24, 0
      %p86 = por %p84, %p85
      %s88 = sadd.s32 %s87, 1
      %p91 = scmp.eq.s32.totalorder %s18, 3
      %p92 = scmp.ne.s32.totalorder %s87, %s89
      %p93 = scmp.eq.s32.totalorder %s18, 0
      %p94 = por %p92, %p93
      %p95 = scmp.ne.s32.totalorder %s87, %s89
      %p96 = scmp.eq.s32.totalorder %s23, 3
      %p97 = por %p95, %p96
      %p98 = scmp.ne.s32.totalorder %s89, %s90
      %p99 = scmp.eq.s32.totalorder %s23, 0
      %p100 = por %p98, %p99
      %p101 = scmp.ne.s32.totalorder %s89, %s90
      %p102 = scmp.eq.s32.totalorder %s24, 3
      %p103 = por %p101, %p102
      %p105 = scmp.ne.s32.totalorder %s90, %s104
      %p106 = scmp.eq.s32.totalorder %s24, 0
      %p107 = por %p105, %p106
      %s109 = sadd.s32 %s108, 1
      %p112 = scmp.eq.s32.totalorder %s18, 3
      %p113 = scmp.ne.s32.totalorder %s108, %s110
      %p114 = scmp.eq.s32.totalorder %s18, 0
      %p115 = por %p113, %p114
      %p116 = scmp.ne.s32.totalorder %s108, %s110
      %p117 = scmp.eq.s32.totalorder %s23, 3
      %p118 = por %p116, %p117
      %p119 = scmp.ne.s32.totalorder %s110, %s111
      %p120 = scmp.eq.s32.totalorder %s23, 0
      %p121 = por %p119, %p120
      %p122 = scmp.ne.s32.totalorder %s110, %s111
      %p123 = scmp.eq.s32.totalorder %s24, 3
      %p124 = por %p122, %p123
      %p126 = scmp.ne.s32.totalorder %s111, %s125
      %p127 = scmp.eq.s32.totalorder %s24, 0
      %p128 = por %p126, %p127
      %s130 = sadd.s32 %s129, 1
      %p133 = scmp.eq.s32.totalorder %s18, 3
      %p134 = scmp.ne.s32.totalorder %s129, %s131
      %p135 = scmp.eq.s32.totalorder %s18, 0
      %p136 = por %p134, %p135
      %p137 = scmp.ne.s32.totalorder %s129, %s131
      %p138 = scmp.eq.s32.totalorder %s23, 3
      %p139 = por %p137, %p138
      %p140 = scmp.ne.s32.totalorder %s131, %s132
      %p141 = scmp.eq.s32.totalorder %s23, 0
      %p142 = por %p140, %p141
      %p143 = scmp.ne.s32.totalorder %s131, %s132
      %p144 = scmp.eq.s32.totalorder %s24, 3
      %p145 = por %p143, %p144
      %p147 = scmp.ne.s32.totalorder %s132, %s146
      %p148 = scmp.eq.s32.totalorder %s24, 0
      %p149 = por %p147, %p148
      %s151 = sadd.s32 %s150, 1
      %p154 = scmp.eq.s32.totalorder %s18, 3
      %p155 = scmp.ne.s32.totalorder %s150, %s152
      %p156 = scmp.eq.s32.totalorder %s18, 0
      %p157 = por %p155, %p156
      %p158 = scmp.ne.s32.totalorder %s150, %s152
      %p159 = scmp.eq.s32.totalorder %s23, 3
      %p160 = por %p158, %p159
      %p161 = scmp.ne.s32.totalorder %s152, %s153
      %p162 = scmp.eq.s32.totalorder %s23, 0
      %p163 = por %p161, %p162
      %p164 = scmp.ne.s32.totalorder %s152, %s153
      %p165 = scmp.eq.s32.totalorder %s24, 3
      %p166 = por %p164, %p165
      %p168 = scmp.ne.s32.totalorder %s153, %s167
      %p169 = scmp.eq.s32.totalorder %s24, 0
      %p170 = por %p168, %p169
      %s171 = ssub.s32 %s26, %s33
      %p172 = scmp.eq.s32.totalorder %s171, 0
      %s174 = sadd.s32 %s173, 1
      %s175 = scalar_select %p172, %s173, %s174
      %p178 = pneg %p172
      %p179 = scmp.eq.s32.totalorder %s18, 3
      %p180 = por %p178, %p179
      %p181 = scmp.ne.s32.totalorder %s173, %s176
      %p182 = scmp.eq.s32.totalorder %s18, 0
      %p183 = por %p181, %p182
      %p184 = scmp.ne.s32.totalorder %s173, %s176
      %p185 = scmp.eq.s32.totalorder %s23, 3
      %p186 = por %p184, %p185
      %p187 = scmp.ne.s32.totalorder %s176, %s177
      %p188 = scmp.eq.s32.totalorder %s23, 0
      %p189 = por %p187, %p188
      %p190 = scmp.ne.s32.totalorder %s176, %s177
      %p191 = scmp.eq.s32.totalorder %s24, 3
      %p192 = por %p190, %p191
      %p194 = scmp.ne.s32.totalorder %s177, %s193
      %p195 = scmp.eq.s32.totalorder %s24, 0
      %p196 = por %p194, %p195
      %s197 = ssub.s32 %s26, %s33
      %p198 = scmp.eq.s32.totalorder %s197, 0
      %s200 = sadd.s32 %s199, 1
      %s201 = scalar_select %p198, %s199, %s200
      %p204 = pneg %p198
      %p205 = scmp.eq.s32.totalorder %s18, 3
      %p206 = por %p204, %p205
      %p207 = scmp.ne.s32.totalorder %s199, %s202
      %p208 = scmp.eq.s32.totalorder %s18, 0
      %p209 = por %p207, %p208
      %p210 = scmp.ne.s32.totalorder %s199, %s202
      %p211 = scmp.eq.s32.totalorder %s23, 3
      %p212 = por %p210, %p211
      %p213 = scmp.ne.s32.totalorder %s202, %s203
      %p214 = scmp.eq.s32.totalorder %s23, 0
      %p215 = por %p213, %p214
      %p216 = scmp.ne.s32.totalorder %s202, %s203
      %p217 = scmp.eq.s32.totalorder %s24, 3
      %p218 = por %p216, %p217
      %p220 = scmp.ne.s32.totalorder %s203, %s219
      %p221 = scmp.eq.s32.totalorder %s24, 0
      %p222 = por %p220, %p221
      %s223 = ssub.s32 %s25, %s37
      %p224 = scmp.eq.s32.totalorder %s223, 0
      %s226 = sadd.s32 %s225, 1
      %s227 = scalar_select %p224, %s225, %s226
      %p230 = pneg %p224
      %p231 = scmp.eq.s32.totalorder %s18, 3
      %p232 = por %p230, %p231
      %p233 = scmp.ne.s32.totalorder %s225, %s228
      %p234 = scmp.eq.s32.totalorder %s18, 0
      %p235 = por %p233, %p234
      %p236 = scmp.ne.s32.totalorder %s225, %s228
      %p237 = scmp.eq.s32.totalorder %s23, 3
      %p238 = por %p236, %p237
      %p239 = scmp.ne.s32.totalorder %s228, %s229
      %p240 = scmp.eq.s32.totalorder %s23, 0
      %p241 = por %p239, %p240
      %p242 = scmp.ne.s32.totalorder %s228, %s229
      %p243 = scmp.eq.s32.totalorder %s24, 3
      %p244 = por %p242, %p243
      %p246 = scmp.ne.s32.totalorder %s229, %s245
      %p247 = scmp.eq.s32.totalorder %s24, 0
      %p248 = por %p246, %p247
      %s250 = sadd.s32 %s249, 1
      %p253 = scmp.eq.s32.totalorder %s18, 3
      %p254 = scmp.ne.s32.totalorder %s249, %s251
      %p255 = scmp.eq.s32.totalorder %s18, 0
      %p256 = por %p254, %p255
      %p257 = scmp.ne.s32.totalorder %s249, %s251
      %p258 = scmp.eq.s32.totalorder %s23, 3
      %p259 = por %p257, %p258
      %p260 = scmp.ne.s32.totalorder %s251, %s252
      %p261 = scmp.eq.s32.totalorder %s23, 0
      %p262 = por %p260, %p261
      %p263 = scmp.ne.s32.totalorder %s251, %s252
      %p264 = scmp.eq.s32.totalorder %s24, 3
      %p265 = por %p263, %p264
      %p267 = scmp.ne.s32.totalorder %s252, %s266
      %p268 = scmp.eq.s32.totalorder %s24, 0
      %p269 = por %p267, %p268
      %p270 = scmp.le.s32.totalorder 1, %s18
      %p271 = scmp.lt.s32.totalorder %s18, 5
      %p272 = pnand %p270, %p271
      %p273 = pneg %p272
      // Predicated region
      $region9: #{decoder_rnn_decode.1} parent=5 // pred_check
        _
      $region10: #{decoder_rnn_decode.1} parent=5 // pred_check_branch
        %275 = sbr.rel (%p272) target = $region12
      $region11: #{decoder_rnn_decode.1} parent=5 // pred_region
        %s276 = ssub.s32 %s18, 1
        // Predicated region
        $region13: #{decoder_rnn_decode.1} parent=11 // pred_check
          %p277 = pneg %p58
        $region14: #{decoder_rnn_decode.1} parent=11 // pred_check_branch
          %279 = sbr.rel (%p277) target = $region16
        $region15: #{decoder_rnn_decode.1} parent=11 // pred_region
          %s280 = sld [smem:[#allocation6 + %s27]]
          %p281 = scmp.lt.s32.totalorder %s280, 499
          %s282 = scalar_select %p281, %s280, 499
          %s283 = scalar_lea.vmem %s1, %s282
          %s284 = sld [smem:[#allocation6 + %s27]]
        $region16: #{decoder_rnn_decode.1} parent=11 // pred_fallthru
          _
        // Predicated region
        $region17: #{decoder_rnn_decode.1} parent=11 // pred_check
          %p285 = pneg %p79
        $region18: #{decoder_rnn_decode.1} parent=11 // pred_check_branch
          %287 = sbr.rel (%p285) target = $region20
        $region19: #{decoder_rnn_decode.1} parent=11 // pred_region
          _
        $region20: #{decoder_rnn_decode.1} parent=11 // pred_fallthru
          _
        // Predicated region
        $region21: #{decoder_rnn_decode.1} parent=11 // pred_check
          %p288 = pneg %p100
        $region22: #{decoder_rnn_decode.1} parent=11 // pred_check_branch
          %290 = sbr.rel (%p288) target = $region24
        $region23: #{decoder_rnn_decode.1} parent=11 // pred_region
          _
        $region24: #{decoder_rnn_decode.1} parent=11 // pred_fallthru
          _
        // Predicated region
        $region25: #{decoder_rnn_decode.1} parent=11 // pred_check
          %p291 = pneg %p121
        $region26: #{decoder_rnn_decode.1} parent=11 // pred_check_branch
          %293 = sbr.rel (%p291) target = $region28
        $region27: #{decoder_rnn_decode.1} parent=11 // pred_region
          _
        $region28: #{decoder_rnn_decode.1} parent=11 // pred_fallthru
          _
        // Predicated region
        $region29: #{decoder_rnn_decode.1} parent=11 // pred_check
          %p294 = pneg %p142
        $region30: #{decoder_rnn_decode.1} parent=11 // pred_check_branch
          %296 = sbr.rel (%p294) target = $region32
        $region31: #{decoder_rnn_decode.1} parent=11 // pred_region
          _
        $region32: #{decoder_rnn_decode.1} parent=11 // pred_fallthru
          _
        // Predicated region
        $region33: #{decoder_rnn_decode.1} parent=11 // pred_check
          %p297 = pneg %p163
        $region34: #{decoder_rnn_decode.1} parent=11 // pred_check_branch
          %299 = sbr.rel (%p297) target = $region36
        $region35: #{decoder_rnn_decode.1} parent=11 // pred_region
          _
        $region36: #{decoder_rnn_decode.1} parent=11 // pred_fallthru
          _
      $region12: #{decoder_rnn_decode.1} parent=5 // pred_fallthru
        _
      %p300 = scmp.lt.s32.totalorder %s18, 4
      // Predicated region
      $region37: #{decoder_rnn_decode.1} parent=5 // pred_check
        %p301 = pneg %p300
      $region38: #{decoder_rnn_decode.1} parent=5 // pred_check_branch
        %303 = sbr.rel (%p301) target = $region40
      $region39: #{decoder_rnn_decode.1} parent=5 // pred_region
        // Predicated region
        $region41: #{decoder_rnn_decode.1} parent=39 // pred_check
          %p304 = pneg %p183
        $region42: #{decoder_rnn_decode.1} parent=39 // pred_check_branch
          %306 = sbr.rel (%p304) target = $region44
        $region43: #{decoder_rnn_decode.1} parent=39 // pred_region
          %s307 = sand.u32 %s173, 1
          %s308 = sand.u32 %s173, 1
          %s309 = smul.addr %s308, 64
          %s310 = scalar_lea.vmem [#allocation7], %s309
          %s311 = smul.addr %s26, 4
          %s312 = scalar_lea.vmem %s7, %s311
          // Predicated region
          $region45: #{decoder_rnn_decode.1} parent=43 // pred_check
            _
          $region46: #{decoder_rnn_decode.1} parent=43 // pred_check_branch
            %314 = sbr.rel (0) target = $region48
          $region47: #{decoder_rnn_decode.1} parent=43 // pred_region
            // Predicated region
            $region49: #{decoder_rnn_decode.1} parent=47 // pred_check
              _
            $region50: #{decoder_rnn_decode.1} parent=47 // pred_check_branch
              %316 = sbr.rel target = $region52
            $region51: #{decoder_rnn_decode.1} parent=47 // pred_region
              // Predicated region
              $region64: #{decoder_rnn_decode.1} parent=51 // pred_check
                _
              $region65: #{decoder_rnn_decode.1} parent=51 // pred_check_branch
                %361 = sbr.rel (0) target = $region67
              $region66: #{decoder_rnn_decode.1} parent=51 // pred_region
                loop: start=0, step=1, limit=1
                $region68: #{decoder_rnn_decode.1} parent=66 // loop_pre_header
                  _
                $region69: #{decoder_rnn_decode.1} parent=66 // loop_header
                  %s363 = sphi 0, %s367
                  %p364 = scmp.ge.s32.totalorder %s363, 1
                  %s368 = sphi %s312, %s312
                  %s369 = sphi %s310, %s310
                $region70: #{decoder_rnn_decode.1} parent=66 // loop_header_branch
                  %366 = sbr.rel (%p364) target = $region74
                $region71: #{decoder_rnn_decode.1} parent=66 // loop_body
                  _
                $region72: #{decoder_rnn_decode.1} parent=66 // loop_footer
                  %s367 = sadd.s32 1, %s363
                $region73: #{decoder_rnn_decode.1} parent=66 // loop_footer_branch
                  %362 = sbr.rel target = $region69
                $region74: #{decoder_rnn_decode.1} parent=66 // loop_exit
                  _
                loop: start=0, step=1, limit=1
                $region75: #{decoder_rnn_decode.1} parent=66 // loop_pre_header
                  _
                $region76: #{decoder_rnn_decode.1} parent=66 // loop_header
                  %s372 = sphi 0, %s376
                  %p373 = scmp.ge.s32.totalorder %s372, 1
                  %s377 = sphi %s312, %s312
                  %s378 = sphi %s310, %s310
                $region77: #{decoder_rnn_decode.1} parent=66 // loop_header_branch
                  %375 = sbr.rel (%p373) target = $region81
                $region78: #{decoder_rnn_decode.1} parent=66 // loop_body
                  %v379 = vld [vmem:[%s377] sm:$0xf]
                  %380 = vst [vmem:[%s378] sm:$0xf] %v379
                  %v381 = vld [vmem:[%s377 + $0x10] sm:$0xf]
                  %382 = vst [vmem:[%s378 + $0x4] sm:$0xf] %v381
                  %v383 = vld [vmem:[%s377 + $0x20] sm:$0xf]
                  %384 = vst [vmem:[%s378 + $0x8] sm:$0xf] %v383
                  %v385 = vld [vmem:[%s377 + $0x30] sm:$0xf]
                  %386 = vst [vmem:[%s378 + $0xc] sm:$0xf] %v385
                  %v387 = vld [vmem:[%s377 + $0x40] sm:$0xf]
                  %388 = vst [vmem:[%s378 + $0x10] sm:$0xf] %v387
                  %v389 = vld [vmem:[%s377 + $0x50] sm:$0xf]
                  %390 = vst [vmem:[%s378 + $0x14] sm:$0xf] %v389
                  %v391 = vld [vmem:[%s377 + $0x60] sm:$0xf]
                  %392 = vst [vmem:[%s378 + $0x18] sm:$0xf] %v391
                  %v393 = vld [vmem:[%s377 + $0x70] sm:$0xf]
                  %394 = vst [vmem:[%s378 + $0x1c] sm:$0xf] %v393
                  %v395 = vld [vmem:[%s377 + $0x80] sm:$0xf]
                  %396 = vst [vmem:[%s378 + $0x20] sm:$0xf] %v395
                  %v397 = vld [vmem:[%s377 + $0x90] sm:$0xf]
                  %398 = vst [vmem:[%s378 + $0x24] sm:$0xf] %v397
                  %v399 = vld [vmem:[%s377 + $0xa0] sm:$0xf]
                  %400 = vst [vmem:[%s378 + $0x28] sm:$0xf] %v399
                  %v401 = vld [vmem:[%s377 + $0xb0] sm:$0xf]
                  %402 = vst [vmem:[%s378 + $0x2c] sm:$0xf] %v401
                  %v403 = vld [vmem:[%s377 + $0xc0] sm:$0xf]
                  %404 = vst [vmem:[%s378 + $0x30] sm:$0xf] %v403
                  %v405 = vld [vmem:[%s377 + $0xd0] sm:$0xf]
                  %406 = vst [vmem:[%s378 + $0x34] sm:$0xf] %v405
                  %v407 = vld [vmem:[%s377 + $0xe0] sm:$0xf]
                  %408 = vst [vmem:[%s378 + $0x38] sm:$0xf] %v407
                  %v409 = vld [vmem:[%s377 + $0xf0] sm:$0xf]
                  %410 = vst [vmem:[%s378 + $0x3c] sm:$0xf] %v409
                $region79: #{decoder_rnn_decode.1} parent=66 // loop_footer
                  %s376 = sadd.s32 1, %s372
                $region80: #{decoder_rnn_decode.1} parent=66 // loop_footer_branch
                  %371 = sbr.rel target = $region76
                $region81: #{decoder_rnn_decode.1} parent=66 // loop_exit
                  _
              $region67: #{decoder_rnn_decode.1} parent=51 // pred_fallthru
                _
            $region52: #{decoder_rnn_decode.1} parent=47 // pred_fallthru
              _
            // Predicated region
            $region53: #{decoder_rnn_decode.1} parent=47 // pred_check
              _
            $region54: #{decoder_rnn_decode.1} parent=47 // pred_check_branch
              %318 = sbr.rel (0) target = $region56
            $region55: #{decoder_rnn_decode.1} parent=47 // pred_region
              loop: start=0, step=1, limit=1
              $region57: #{decoder_rnn_decode.1} parent=55 // loop_pre_header
                _
              $region58: #{decoder_rnn_decode.1} parent=55 // loop_header
                %s321 = sphi 0, %s325
                %p322 = scmp.ge.s32.totalorder %s321, 1
                %s326 = sphi %s312, %s312
                %s327 = sphi %s310, %s310
              $region59: #{decoder_rnn_decode.1} parent=55 // loop_header_branch
                %324 = sbr.rel (%p322) target = $region63
              $region60: #{decoder_rnn_decode.1} parent=55 // loop_body
                %v328 = vld [vmem:[%s326] sm:$0xf]
                %329 = vst [vmem:[%s327] sm:$0xf] %v328
                %v330 = vld [vmem:[%s326 + $0x10] sm:$0xf]
                %331 = vst [vmem:[%s327 + $0x4] sm:$0xf] %v330
                %v332 = vld [vmem:[%s326 + $0x20] sm:$0xf]
                %333 = vst [vmem:[%s327 + $0x8] sm:$0xf] %v332
                %v334 = vld [vmem:[%s326 + $0x30] sm:$0xf]
                %335 = vst [vmem:[%s327 + $0xc] sm:$0xf] %v334
                %v336 = vld [vmem:[%s326 + $0x40] sm:$0xf]
                %337 = vst [vmem:[%s327 + $0x10] sm:$0xf] %v336
                %v338 = vld [vmem:[%s326 + $0x50] sm:$0xf]
                %339 = vst [vmem:[%s327 + $0x14] sm:$0xf] %v338
                %v340 = vld [vmem:[%s326 + $0x60] sm:$0xf]
                %341 = vst [vmem:[%s327 + $0x18] sm:$0xf] %v340
                %v342 = vld [vmem:[%s326 + $0x70] sm:$0xf]
                %343 = vst [vmem:[%s327 + $0x1c] sm:$0xf] %v342
                %v344 = vld [vmem:[%s326 + $0x80] sm:$0xf]
                %345 = vst [vmem:[%s327 + $0x20] sm:$0xf] %v344
                %v346 = vld [vmem:[%s326 + $0x90] sm:$0xf]
                %347 = vst [vmem:[%s327 + $0x24] sm:$0xf] %v346
                %v348 = vld [vmem:[%s326 + $0xa0] sm:$0xf]
                %349 = vst [vmem:[%s327 + $0x28] sm:$0xf] %v348
                %v350 = vld [vmem:[%s326 + $0xb0] sm:$0xf]
                %351 = vst [vmem:[%s327 + $0x2c] sm:$0xf] %v350
                %v352 = vld [vmem:[%s326 + $0xc0] sm:$0xf]
                %353 = vst [vmem:[%s327 + $0x30] sm:$0xf] %v352
                %v354 = vld [vmem:[%s326 + $0xd0] sm:$0xf]
                %355 = vst [vmem:[%s327 + $0x34] sm:$0xf] %v354
                %v356 = vld [vmem:[%s326 + $0xe0] sm:$0xf]
                %357 = vst [vmem:[%s327 + $0x38] sm:$0xf] %v356
                %v358 = vld [vmem:[%s326 + $0xf0] sm:$0xf]
                %359 = vst [vmem:[%s327 + $0x3c] sm:$0xf] %v358
              $region61: #{decoder_rnn_decode.1} parent=55 // loop_footer
                %s325 = sadd.s32 1, %s321
              $region62: #{decoder_rnn_decode.1} parent=55 // loop_footer_branch
                %320 = sbr.rel target = $region58
              $region63: #{decoder_rnn_decode.1} parent=55 // loop_exit
                _
            $region56: #{decoder_rnn_decode.1} parent=47 // pred_fallthru
              _
          $region48: #{decoder_rnn_decode.1} parent=43 // pred_fallthru
            _
          %411 = vnop
        $region44: #{decoder_rnn_decode.1} parent=39 // pred_fallthru
          _
        // Predicated region
        $region82: #{decoder_rnn_decode.1} parent=39 // pred_check
          %p412 = pneg %p209
        $region83: #{decoder_rnn_decode.1} parent=39 // pred_check_branch
          %414 = sbr.rel (%p412) target = $region85
        $region84: #{decoder_rnn_decode.1} parent=39 // pred_region
          %p415 = scmp.lt.s32.totalorder %s26, 3
          %s416 = scalar_select %p415, %s26, 3
          %s417 = scalar_lea.vmem %s8, %s416
        $region85: #{decoder_rnn_decode.1} parent=39 // pred_fallthru
          _
      $region40: #{decoder_rnn_decode.1} parent=5 // pred_fallthru
        _
      %p418 = scmp.le.s32.totalorder 1, %s18
      %p419 = scmp.lt.s32.totalorder %s18, 5
      %p420 = pnand %p418, %p419
      %p421 = pneg %p420
      // Predicated region
      $region86: #{decoder_rnn_decode.1} parent=5 // pred_check
        _
      $region87: #{decoder_rnn_decode.1} parent=5 // pred_check_branch
        %423 = sbr.rel (%p420) target = $region89
      $region88: #{decoder_rnn_decode.1} parent=5 // pred_region
        %s424 = ssub.s32 %s18, 1
        %s425 = sand.u32 %s176, 1
        %s426 = sand.u32 %s176, 1
        %s427 = smul.addr %s426, 64
        %s428 = scalar_lea.vmem [#allocation7], %s427
        // Predicated region
        $region90: #{decoder_rnn_decode.1} parent=88 // pred_check
          %p429 = pneg %p189
        $region91: #{decoder_rnn_decode.1} parent=88 // pred_check_branch
          %431 = sbr.rel (%p429) target = $region93
        $region92: #{decoder_rnn_decode.1} parent=88 // pred_region
          _
        $region93: #{decoder_rnn_decode.1} parent=88 // pred_fallthru
          _
        %s432 = sld [smem:[#allocation6 + %s27]]
        %p433 = scmp.lt.s32.totalorder %s432, 499
        %s434 = scalar_select %p433, %s432, 499
        %s435 = scalar_lea.vmem %s1, %s434
        %p436 = pneg %p58
        %p437 = pneg %p55
        %p438 = pneg %p79
        %p439 = pneg %p76
        %p440 = pneg %p100
        %p441 = pneg %p97
        %p442 = pneg %p121
        %p443 = pneg %p118
        %p444 = pneg %p142
        %p445 = pneg %p139
        %p446 = pneg %p163
        %p447 = pneg %p160
        %s448 = sand.u32 %s176, 1
        %s449 = sand.u32 %s176, 1
        %s450 = smul.addr %s449, 64
        %s451 = scalar_lea.vmem [#allocation7], %s450
        %p452 = pneg %p189
        %p453 = pneg %p186
        %p454 = scmp.lt.s32.totalorder %s28, 3
        %s455 = scalar_select %p454, %s28, 3
        %s456 = scalar_lea.vmem %s8, %s455
        %p457 = pneg %p215
        %p458 = pneg %p212
        %p459 = pneg %p241
        %p460 = pneg %p238
        %p461 = scmp.lt.s32.totalorder %s27, 0
        %s462 = scalar_select %p461, %s27, 0
        %s463 = smul.addr %s462, 4
        %s464 = scalar_lea.vmem %s9, %s463
        %p465 = pneg %p262
        %p466 = pneg %p259
        %s467 = sld [smem:[#allocation6 + %s27]]
        %p468 = scmp.lt.s32.totalorder %s467, 499
        %s469 = scalar_select %p468, %s467, 499
        %s470 = scalar_lea.vmem %s1, %s469
        %s471 = sld [smem:[#allocation6 + %s27]]
        %p472 = scmp.lt.s32.totalorder %s28, 3
        %s473 = scalar_select %p472, %s28, 3
        %s474 = scalar_lea.vmem %s8, %s473
        %p475 = scmp.lt.s32.totalorder %s27, 0
        %s476 = scalar_select %p475, %s27, 0
        %s477 = smul.addr %s476, 4
        %s478 = scalar_lea.vmem %s9, %s477
        %p480 = scmp.eq.s32.totalorder %s28, 0
        // Predicated region
        $region94: #{decoder_rnn_decode.1} parent=88 // pred_check
          %p481 = pneg %p480
        $region95: #{decoder_rnn_decode.1} parent=88 // pred_check_branch
          %483 = sbr.rel (%p481) target = $region97
        $region96: #{decoder_rnn_decode.1} parent=88 // pred_region
          %p484 = scmp.eq.s32.totalorder %s27, 0
          // Predicated region
          $region98: #{decoder_rnn_decode.1} parent=96 // pred_check
            %p485 = pneg %p484
          $region99: #{decoder_rnn_decode.1} parent=96 // pred_check_branch
            %487 = sbr.rel (%p485) target = $region101
          $region100: #{decoder_rnn_decode.1} parent=96 // pred_region
            %v488 = vld [vmem:[%s2] sm:$0x1]
            %489 = vst [vmem:[#allocation2] sm:$0x1] %v488
          $region101: #{decoder_rnn_decode.1} parent=96 // pred_fallthru
            _
          %v490 = vld [vmem:[%s470] sm:$0x1]
          %v491 = vmax.bf16 %v490, 0
          %v492 = vld [vmem:[#allocation2] sm:$0x1]
          %v493 = vpack.c.bf16 %v492, %v492
          %v494 = vld [vmem:[%s3] sm:$0xff]
          %v495 = vld [vmem:[%s3 + $0x8] sm:$0xf]
          %v496 = vld [vmem:[%s3 + $0xc] sm:$0xff]
          %v497 = vld [vmem:[%s3 + $0x14] sm:$0xf]
          %v498 = vld [vmem:[%s3 + $0x18] sm:$0xff]
          %v499 = vld [vmem:[%s3 + $0x20] sm:$0xf]
          %v500 = vld [vmem:[%s3 + $0x24] sm:$0xff]
          %v501 = vld [vmem:[%s3 + $0x2c] sm:$0xf]
          %v502 = vld [vmem:[%s3 + $0x30] sm:$0xff]
          %v503 = vld [vmem:[%s3 + $0x38] sm:$0xf]
          %v504 = vld [vmem:[%s3 + $0x3c] sm:$0xff]
          %v505 = vld [vmem:[%s3 + $0x44] sm:$0xf]
          %v506 = vld [vmem:[%s3 + $0x48] sm:$0xff]
          %v507 = vld [vmem:[%s3 + $0x50] sm:$0xf]
          %v508 = vld [vmem:[%s3 + $0x54] sm:$0xff]
          %v509 = vld [vmem:[%s3 + $0x5c] sm:$0xf]
          %v510 = vld [vmem:[%s3 + $0x60] sm:$0xff]
          %v511 = vld [vmem:[%s3 + $0x68] sm:$0xf]
          %v512 = vld [vmem:[%s3 + $0x6c] sm:$0xff]
          %v513 = vld [vmem:[%s3 + $0x74] sm:$0xf]
          %v514 = vld [vmem:[%s3 + $0x78] sm:$0xff]
          %v515 = vld [vmem:[%s3 + $0x80] sm:$0xf]
          %v516 = vld [vmem:[%s3 + $0x84] sm:$0xff]
          %v517 = vld [vmem:[%s3 + $0x8c] sm:$0xf]
          %v518 = vld [vmem:[%s3 + $0x90] sm:$0xff]
          %v519 = vld [vmem:[%s3 + $0x98] sm:$0xf]
          %v520 = vld [vmem:[%s3 + $0x9c] sm:$0xff]
          %v521 = vld [vmem:[%s3 + $0xa4] sm:$0xf]
          %v522 = vld [vmem:[%s3 + $0xa8] sm:$0xff]
          %v523 = vld [vmem:[%s3 + $0xb0] sm:$0xf]
          %v524 = vld [vmem:[%s3 + $0xb4] sm:$0xff]
          %v525 = vld [vmem:[%s3 + $0xbc] sm:$0xf]
          %v526 = vld [vmem:[%s5] sm:$0x7]
          %v559 = vunpack.c.l.b16 %v494
          %v560 = vunpack.c.h.b16 %v494
          %v561 = vunpack.c.l.b16 %v495
          %v562 = vunpack.c.l.b16 %v496
          %v563 = vunpack.c.h.b16 %v496
          %v564 = vunpack.c.l.b16 %v497
          %v565 = vunpack.c.l.b16 %v498
          %v566 = vunpack.c.h.b16 %v498
          %v567 = vunpack.c.l.b16 %v499
          %v568 = vunpack.c.l.b16 %v500
          %v569 = vunpack.c.h.b16 %v500
          %v570 = vunpack.c.l.b16 %v501
          %v571 = vunpack.c.l.b16 %v502
          %v572 = vunpack.c.h.b16 %v502
          %v573 = vunpack.c.l.b16 %v503
          %v574 = vunpack.c.l.b16 %v504
          %v575 = vunpack.c.h.b16 %v504
          %v576 = vunpack.c.l.b16 %v505
          %v577 = vunpack.c.l.b16 %v506
          %v578 = vunpack.c.h.b16 %v506
          %v579 = vunpack.c.l.b16 %v507
          %v580 = vunpack.c.l.b16 %v508
          %v581 = vunpack.c.h.b16 %v508
          %v582 = vunpack.c.l.b16 %v509
          %v583 = vunpack.c.l.b16 %v510
          %v584 = vunpack.c.h.b16 %v510
          %v585 = vunpack.c.l.b16 %v511
          %v586 = vunpack.c.l.b16 %v512
          %v587 = vunpack.c.h.b16 %v512
          %v588 = vunpack.c.l.b16 %v513
          %v589 = vunpack.c.l.b16 %v514
          %v590 = vunpack.c.h.b16 %v514
          %v591 = vunpack.c.l.b16 %v515
          %v592 = vunpack.c.l.b16 %v516
          %v593 = vunpack.c.h.b16 %v516
          %v594 = vunpack.c.l.b16 %v517
          %v595 = vunpack.c.l.b16 %v518
          %v596 = vunpack.c.h.b16 %v518
          %v597 = vunpack.c.l.b16 %v519
          %v598 = vunpack.c.l.b16 %v520
          %v599 = vunpack.c.h.b16 %v520
          %v600 = vunpack.c.l.b16 %v521
          %v601 = vunpack.c.l.b16 %v522
          %v602 = vunpack.c.h.b16 %v522
          %v603 = vunpack.c.l.b16 %v523
          %v604 = vunpack.c.l.b16 %v524
          %v605 = vunpack.c.h.b16 %v524
          %v606 = vunpack.c.l.b16 %v525
          %v607 = vpack.c.b16 %v562, %v559
          %v608 = vpack.c.b16 %v563, %v560
          %v609 = vpack.c.b16 %v564, %v561
          %v610 = vpack.c.b16 %v568, %v565
          %v611 = vpack.c.b16 %v569, %v566
          %v612 = vpack.c.b16 %v570, %v567
          %v613 = vpack.c.b16 %v574, %v571
          %v614 = vpack.c.b16 %v575, %v572
          %v615 = vpack.c.b16 %v576, %v573
          %v616 = vpack.c.b16 %v580, %v577
          %v617 = vpack.c.b16 %v581, %v578
          %v618 = vpack.c.b16 %v582, %v579
          %v619 = vpack.c.b16 %v586, %v583
          %v620 = vpack.c.b16 %v587, %v584
          %v621 = vpack.c.b16 %v588, %v585
          %v622 = vpack.c.b16 %v592, %v589
          %v623 = vpack.c.b16 %v593, %v590
          %v624 = vpack.c.b16 %v594, %v591
          %v625 = vpack.c.b16 %v598, %v595
          %v626 = vpack.c.b16 %v599, %v596
          %v627 = vpack.c.b16 %v600, %v597
          %v628 = vpack.c.b16 %v604, %v601
          %v629 = vpack.c.b16 %v605, %v602
          %v630 = vpack.c.b16 %v606, %v603
          %v656 = vlaneseq
          %v657 = vshrl.u32 %v656, 7
          %v658 = vsub.s32 0, %v657
          %v659 = vrot.slane %v526, %v658
          %v660 = vlaneseq
          %v661 = vshrl.u32 %v660, 7
          %v662 = vsub.s32 1, %v661
          %v663 = vrot.slane %v526, %v662
          %v664 = vlaneseq
          %v665 = vshrl.u32 %v664, 7
          %v666 = vsub.s32 2, %v665
          %v667 = vrot.slane %v526, %v666
          %671 = vmatprep.subr.bf16.mxu0 %v608
          %672 = vmatpush1.bf16.msra.mxu0 %v607
          %673 = vmatprep.subr.bf16.mxu0 %v611
          %674 = vmatpush1.bf16.msra.mxu0 %v610
          %675 = vmatprep.subr.bf16.mxu0 %v614
          %676 = vmatpush1.bf16.msra.mxu0 %v613
          %677 = vmatprep.subr.bf16.mxu0 %v617
          %678 = vmatpush1.bf16.msra.mxu0 %v616
          %679 = vmatprep.subr.bf16.mxu0 %v620
          %680 = vmatpush1.bf16.msra.mxu0 %v619
          %681 = vmatprep.subr.bf16.mxu0 %v623
          %682 = vmatpush1.bf16.msra.mxu0 %v622
          %683 = vmatprep.subr.bf16.mxu0 %v626
          %684 = vmatpush1.bf16.msra.mxu0 %v625
          %685 = vmatprep.subr.bf16.mxu0 %v629
          %686 = vmatpush1.bf16.msra.mxu0 %v628
          %687 = vmatprep.subr.bf16.mxu0 0
          %688 = vmatpush1.bf16.msra.mxu0 0
          %689 = vmatprep.subr.bf16.mxu0 0
          %690 = vmatpush1.bf16.msra.mxu0 0
          %691 = vmatprep.subr.bf16.mxu0 0
          %692 = vmatpush1.bf16.msra.mxu0 0
          %693 = vmatprep.subr.bf16.mxu0 0
          %694 = vmatpush1.bf16.msra.mxu0 0
          %695 = vmatprep.subr.bf16.mxu0 0
          %696 = vmatpush1.bf16.msra.mxu0 0
          %697 = vmatprep.subr.bf16.mxu0 0
          %698 = vmatpush1.bf16.msra.mxu0 0
          %699 = vmatprep.subr.bf16.mxu0 0
          %700 = vmatpush1.bf16.msra.mxu0 0
          %701 = vmatprep.subr.bf16.mxu0 0
          %702 = vmatpush1.bf16.msra.mxu0 0
          %703 = vmatprep.mubr.bf16.mxu0 0
          %704 = vmatmul.mubr.bf16.gmra.mrb[0].mxu0 %v491
          %v705 = vpop.f32.mrb[0].mxu0
          %v706 = vadd.f32 %v659, %v705
          %v707 = vpop.f32.mrb[0].mxu0
          %v708 = vadd.f32 %v663, %v707
          %v709 = vpop.f32.mrb[0].mxu0
          %v710 = vpop.f32.mrb[0].mxu0
          %711 = vdwg.mxu0
          %712 = vmatprep.subr.bf16.mxu0 0
          %713 = vmatpush1.bf16.msra.mxu0 %v609
          %714 = vmatprep.subr.bf16.mxu0 0
          %715 = vmatpush1.bf16.msra.mxu0 %v612
          %716 = vmatprep.subr.bf16.mxu0 0
          %717 = vmatpush1.bf16.msra.mxu0 %v615
          %718 = vmatprep.subr.bf16.mxu0 0
          %719 = vmatpush1.bf16.msra.mxu0 %v618
          %720 = vmatprep.subr.bf16.mxu0 0
          %721 = vmatpush1.bf16.msra.mxu0 %v621
          %722 = vmatprep.subr.bf16.mxu0 0
          %723 = vmatpush1.bf16.msra.mxu0 %v624
          %724 = vmatprep.subr.bf16.mxu0 0
          %725 = vmatpush1.bf16.msra.mxu0 %v627
          %726 = vmatprep.subr.bf16.mxu0 0
          %727 = vmatpush1.bf16.msra.mxu0 %v630
          %728 = vmatprep.subr.bf16.mxu0 0
          %729 = vmatpush1.bf16.msra.mxu0 0
          %730 = vmatprep.subr.bf16.mxu0 0
          %731 = vmatpush1.bf16.msra.mxu0 0
          %732 = vmatprep.subr.bf16.mxu0 0
          %733 = vmatpush1.bf16.msra.mxu0 0
          %734 = vmatprep.subr.bf16.mxu0 0
          %735 = vmatpush1.bf16.msra.mxu0 0
          %736 = vmatprep.subr.bf16.mxu0 0
          %737 = vmatpush1.bf16.msra.mxu0 0
          %738 = vmatprep.subr.bf16.mxu0 0
          %739 = vmatpush1.bf16.msra.mxu0 0
          %740 = vmatprep.subr.bf16.mxu0 0
          %741 = vmatpush1.bf16.msra.mxu0 0
          %742 = vmatprep.subr.bf16.mxu0 0
          %743 = vmatpush1.bf16.msra.mxu0 0
          %744 = vmatprep.mubr.bf16.mxu0 0
          %745 = vmatmul.mubr.bf16.gmra.mrb[0].mxu0 %v491
          %v746 = vpop.f32.mrb[0].mxu0
          %v747 = vadd.f32 %v667, %v746
          %v748 = vpop.f32.mrb[0].mxu0
          %v749 = vpop.f32.mrb[0].mxu0
          %v750 = vpop.f32.mrb[0].mxu0
          %751 = vdwg.mxu0
          %v752 = vld [vmem:[%s4] sm:$0xff]
          %v753 = vld [vmem:[%s4 + $0x8] sm:$0xf]
          %v754 = vld [vmem:[%s4 + $0xc] sm:$0xff]
          %v755 = vld [vmem:[%s4 + $0x14] sm:$0xf]
          %v756 = vld [vmem:[%s4 + $0x18] sm:$0xff]
          %v757 = vld [vmem:[%s4 + $0x20] sm:$0xf]
          %v758 = vld [vmem:[%s4 + $0x24] sm:$0xff]
          %v759 = vld [vmem:[%s4 + $0x2c] sm:$0xf]
          %v760 = vld [vmem:[%s4 + $0x30] sm:$0xff]
          %v761 = vld [vmem:[%s4 + $0x38] sm:$0xf]
          %v762 = vld [vmem:[%s4 + $0x3c] sm:$0xff]
          %v763 = vld [vmem:[%s4 + $0x44] sm:$0xf]
          %v764 = vld [vmem:[%s4 + $0x48] sm:$0xff]
          %v765 = vld [vmem:[%s4 + $0x50] sm:$0xf]
          %v766 = vld [vmem:[%s4 + $0x54] sm:$0xff]
          %v767 = vld [vmem:[%s4 + $0x5c] sm:$0xf]
          %v768 = vld [vmem:[%s4 + $0x60] sm:$0xff]
          %v769 = vld [vmem:[%s4 + $0x68] sm:$0xf]
          %v770 = vld [vmem:[%s4 + $0x6c] sm:$0xff]
          %v771 = vld [vmem:[%s4 + $0x74] sm:$0xf]
          %v772 = vld [vmem:[%s4 + $0x78] sm:$0xff]
          %v773 = vld [vmem:[%s4 + $0x80] sm:$0xf]
          %v774 = vld [vmem:[%s4 + $0x84] sm:$0xff]
          %v775 = vld [vmem:[%s4 + $0x8c] sm:$0xf]
          %v776 = vld [vmem:[%s4 + $0x90] sm:$0xff]
          %v777 = vld [vmem:[%s4 + $0x98] sm:$0xf]
          %v778 = vld [vmem:[%s4 + $0x9c] sm:$0xff]
          %v779 = vld [vmem:[%s4 + $0xa4] sm:$0xf]
          %v780 = vld [vmem:[%s4 + $0xa8] sm:$0xff]
          %v781 = vld [vmem:[%s4 + $0xb0] sm:$0xf]
          %v782 = vld [vmem:[%s4 + $0xb4] sm:$0xff]
          %v783 = vld [vmem:[%s4 + $0xbc] sm:$0xf]
          %v816 = vunpack.c.l.b16 %v752
          %v817 = vunpack.c.h.b16 %v752
          %v818 = vunpack.c.l.b16 %v753
          %v819 = vunpack.c.l.b16 %v754
          %v820 = vunpack.c.h.b16 %v754
          %v821 = vunpack.c.l.b16 %v755
          %v822 = vunpack.c.l.b16 %v756
          %v823 = vunpack.c.h.b16 %v756
          %v824 = vunpack.c.l.b16 %v757
          %v825 = vunpack.c.l.b16 %v758
          %v826 = vunpack.c.h.b16 %v758
          %v827 = vunpack.c.l.b16 %v759
          %v828 = vunpack.c.l.b16 %v760
          %v829 = vunpack.c.h.b16 %v760
          %v830 = vunpack.c.l.b16 %v761
          %v831 = vunpack.c.l.b16 %v762
          %v832 = vunpack.c.h.b16 %v762
          %v833 = vunpack.c.l.b16 %v763
          %v834 = vunpack.c.l.b16 %v764
          %v835 = vunpack.c.h.b16 %v764
          %v836 = vunpack.c.l.b16 %v765
          %v837 = vunpack.c.l.b16 %v766
          %v838 = vunpack.c.h.b16 %v766
          %v839 = vunpack.c.l.b16 %v767
          %v840 = vunpack.c.l.b16 %v768
          %v841 = vunpack.c.h.b16 %v768
          %v842 = vunpack.c.l.b16 %v769
          %v843 = vunpack.c.l.b16 %v770
          %v844 = vunpack.c.h.b16 %v770
          %v845 = vunpack.c.l.b16 %v771
          %v846 = vunpack.c.l.b16 %v772
          %v847 = vunpack.c.h.b16 %v772
          %v848 = vunpack.c.l.b16 %v773
          %v849 = vunpack.c.l.b16 %v774
          %v850 = vunpack.c.h.b16 %v774
          %v851 = vunpack.c.l.b16 %v775
          %v852 = vunpack.c.l.b16 %v776
          %v853 = vunpack.c.h.b16 %v776
          %v854 = vunpack.c.l.b16 %v777
          %v855 = vunpack.c.l.b16 %v778
          %v856 = vunpack.c.h.b16 %v778
          %v857 = vunpack.c.l.b16 %v779
          %v858 = vunpack.c.l.b16 %v780
          %v859 = vunpack.c.h.b16 %v780
          %v860 = vunpack.c.l.b16 %v781
          %v861 = vunpack.c.l.b16 %v782
          %v862 = vunpack.c.h.b16 %v782
          %v863 = vunpack.c.l.b16 %v783
          %v864 = vpack.c.b16 %v819, %v816
          %v865 = vpack.c.b16 %v820, %v817
          %v866 = vpack.c.b16 %v821, %v818
          %v867 = vpack.c.b16 %v825, %v822
          %v868 = vpack.c.b16 %v826, %v823
          %v869 = vpack.c.b16 %v827, %v824
          %v870 = vpack.c.b16 %v831, %v828
          %v871 = vpack.c.b16 %v832, %v829
          %v872 = vpack.c.b16 %v833, %v830
          %v873 = vpack.c.b16 %v837, %v834
          %v874 = vpack.c.b16 %v838, %v835
          %v875 = vpack.c.b16 %v839, %v836
          %v876 = vpack.c.b16 %v843, %v840
          %v877 = vpack.c.b16 %v844, %v841
          %v878 = vpack.c.b16 %v845, %v842
          %v879 = vpack.c.b16 %v849, %v846
          %v880 = vpack.c.b16 %v850, %v847
          %v881 = vpack.c.b16 %v851, %v848
          %v882 = vpack.c.b16 %v855, %v852
          %v883 = vpack.c.b16 %v856, %v853
          %v884 = vpack.c.b16 %v857, %v854
          %v885 = vpack.c.b16 %v861, %v858
          %v886 = vpack.c.b16 %v862, %v859
          %v887 = vpack.c.b16 %v863, %v860
          %912 = vmatprep.subr.bf16.mxu0 %v865
          %913 = vmatpush1.bf16.msra.mxu0 %v864
          %914 = vmatprep.subr.bf16.mxu0 %v868
          %915 = vmatpush1.bf16.msra.mxu0 %v867
          %916 = vmatprep.subr.bf16.mxu0 %v871
          %917 = vmatpush1.bf16.msra.mxu0 %v870
          %918 = vmatprep.subr.bf16.mxu0 %v874
          %919 = vmatpush1.bf16.msra.mxu0 %v873
          %920 = vmatprep.subr.bf16.mxu0 %v877
          %921 = vmatpush1.bf16.msra.mxu0 %v876
          %922 = vmatprep.subr.bf16.mxu0 %v880
          %923 = vmatpush1.bf16.msra.mxu0 %v879
          %924 = vmatprep.subr.bf16.mxu0 %v883
          %925 = vmatpush1.bf16.msra.mxu0 %v882
          %926 = vmatprep.subr.bf16.mxu0 %v886
          %927 = vmatpush1.bf16.msra.mxu0 %v885
          %928 = vmatprep.subr.bf16.mxu0 0
          %929 = vmatpush1.bf16.msra.mxu0 0
          %930 = vmatprep.subr.bf16.mxu0 0
          %931 = vmatpush1.bf16.msra.mxu0 0
          %932 = vmatprep.subr.bf16.mxu0 0
          %933 = vmatpush1.bf16.msra.mxu0 0
          %934 = vmatprep.subr.bf16.mxu0 0
          %935 = vmatpush1.bf16.msra.mxu0 0
          %936 = vmatprep.subr.bf16.mxu0 0
          %937 = vmatpush1.bf16.msra.mxu0 0
          %938 = vmatprep.subr.bf16.mxu0 0
          %939 = vmatpush1.bf16.msra.mxu0 0
          %940 = vmatprep.subr.bf16.mxu0 0
          %941 = vmatpush1.bf16.msra.mxu0 0
          %942 = vmatprep.subr.bf16.mxu0 0
          %943 = vmatpush1.bf16.msra.mxu0 0
          %944 = vmatprep.mubr.bf16.mxu0 0
          %945 = vmatmul.mubr.bf16.gmra.mrb[0].mxu0 %v493
          %v946 = vpop.f32.mrb[0].mxu0
          %v947 = vadd.f32 0.0, %v946
          %v948 = vpop.f32.mrb[0].mxu0
          %v949 = vadd.f32 0.0, %v948
          %v950 = vpop.f32.mrb[0].mxu0
          %v951 = vpop.f32.mrb[0].mxu0
          %952 = vdwg.mxu0
          %953 = vmatprep.subr.bf16.mxu0 0
          %954 = vmatpush1.bf16.msra.mxu0 %v866
          %955 = vmatprep.subr.bf16.mxu0 0
          %956 = vmatpush1.bf16.msra.mxu0 %v869
          %957 = vmatprep.subr.bf16.mxu0 0
          %958 = vmatpush1.bf16.msra.mxu0 %v872
          %959 = vmatprep.subr.bf16.mxu0 0
          %960 = vmatpush1.bf16.msra.mxu0 %v875
          %961 = vmatprep.subr.bf16.mxu0 0
          %962 = vmatpush1.bf16.msra.mxu0 %v878
          %963 = vmatprep.subr.bf16.mxu0 0
          %964 = vmatpush1.bf16.msra.mxu0 %v881
          %965 = vmatprep.subr.bf16.mxu0 0
          %966 = vmatpush1.bf16.msra.mxu0 %v884
          %967 = vmatprep.subr.bf16.mxu0 0
          %968 = vmatpush1.bf16.msra.mxu0 %v887
          %969 = vmatprep.subr.bf16.mxu0 0
          %970 = vmatpush1.bf16.msra.mxu0 0
          %971 = vmatprep.subr.bf16.mxu0 0
          %972 = vmatpush1.bf16.msra.mxu0 0
          %973 = vmatprep.subr.bf16.mxu0 0
          %974 = vmatpush1.bf16.msra.mxu0 0
          %975 = vmatprep.subr.bf16.mxu0 0
          %976 = vmatpush1.bf16.msra.mxu0 0
          %977 = vmatprep.subr.bf16.mxu0 0
          %978 = vmatpush1.bf16.msra.mxu0 0
          %979 = vmatprep.subr.bf16.mxu0 0
          %980 = vmatpush1.bf16.msra.mxu0 0
          %981 = vmatprep.subr.bf16.mxu0 0
          %982 = vmatpush1.bf16.msra.mxu0 0
          %983 = vmatprep.subr.bf16.mxu0 0
          %984 = vmatpush1.bf16.msra.mxu0 0
          %985 = vmatprep.mubr.bf16.mxu0 0
          %986 = vmatmul.mubr.bf16.gmra.mrb[0].mxu0 %v493
          %v987 = vpop.f32.mrb[0].mxu0
          %v988 = vadd.f32 0.0, %v987
          %v989 = vpop.f32.mrb[0].mxu0
          %v990 = vpop.f32.mrb[0].mxu0
          %v991 = vpop.f32.mrb[0].mxu0
          %992 = vdwg.mxu0
          %v993 = vadd.f32 %v706, %v947
          %v994 = vxor.u32 %v993, 2147483648
          %v995 = vmul.f32 %v994, 1.442695
          %v996 = vpow.pop %v995
          %v997 = vadd.f32 %v996, 1.0
          %v998 = vrcp.pop %v997
          %v999 = vmul.f32 1.0, %v998
          %v1000 = vadd.f32 %v708, %v949
          %v1001 = vxor.u32 %v1000, 2147483648
          %v1002 = vmul.f32 %v1001, 1.442695
          %v1003 = vpow.pop %v1002
          %v1004 = vadd.f32 %v1003, 1.0
          %v1005 = vrcp.pop %v1004
          %v1006 = vmul.f32 1.0, %v1005
          %v1007 = vld [vmem:[%s6] sm:$0x1]
          %v1008 = vadd.f32 %v988, %v1007
          %v1009 = vmul.f32 %v999, %v1008
          %v1010 = vadd.f32 %v747, %v1009
          %v1011 = vtanh.pop %v1010
          %v1012 = vsub.f32 1.0, %v1006
          %v1013 = vmul.f32 %v1012, %v1011
          %v1014 = vmul.f32 %v1006, %v492
          %v1015 = vadd.f32 %v1013, %v1014
          %1016 = vst [vmem:[#allocation2] sm:$0x1] %v1015
          %vm1017 = vcmask 0
          %1018 = vst.msk [vmem:[#allocation3] sm:$0x1] %vm1017, -inf
          %1019 = vst.msk [vmem:[#allocation4] sm:$0x1] %vm1017, 0.0
        $region97: #{decoder_rnn_decode.1} parent=88 // pred_fallthru
          _
        %v1020 = vld [vmem:[#allocation2] sm:$0x1]
        %v1021 = vpack.c.bf16 %v1020, %v1020
        %v1022 = vld [vmem:[%s428] sm:$0xf]
        %v1023 = vld [vmem:[%s428 + $0x4] sm:$0xf]
        %v1024 = vld [vmem:[%s428 + $0x8] sm:$0xf]
        %v1025 = vld [vmem:[%s428 + $0xc] sm:$0xf]
        %v1026 = vld [vmem:[%s428 + $0x10] sm:$0xf]
        %v1027 = vld [vmem:[%s428 + $0x14] sm:$0xf]
        %v1028 = vld [vmem:[%s428 + $0x18] sm:$0xf]
        %v1029 = vld [vmem:[%s428 + $0x1c] sm:$0xf]
        %v1030 = vld [vmem:[%s428 + $0x20] sm:$0xf]
        %v1031 = vld [vmem:[%s428 + $0x24] sm:$0xf]
        %v1032 = vld [vmem:[%s428 + $0x28] sm:$0xf]
        %v1033 = vld [vmem:[%s428 + $0x2c] sm:$0xf]
        %v1034 = vld [vmem:[%s428 + $0x30] sm:$0xf]
        %v1035 = vld [vmem:[%s428 + $0x34] sm:$0xf]
        %v1036 = vld [vmem:[%s428 + $0x38] sm:$0xf]
        %v1037 = vld [vmem:[%s428 + $0x3c] sm:$0xf]
        %v1038 = vld [vmem:[%s474] sm:$0x1]
        %v1055 = vunpack.c.l.b16 %v1022
        %v1056 = vunpack.c.l.b16 %v1023
        %v1057 = vunpack.c.l.b16 %v1024
        %v1058 = vunpack.c.l.b16 %v1025
        %v1059 = vunpack.c.l.b16 %v1026
        %v1060 = vunpack.c.l.b16 %v1027
        %v1061 = vunpack.c.l.b16 %v1028
        %v1062 = vunpack.c.l.b16 %v1029
        %v1063 = vunpack.c.l.b16 %v1030
        %v1064 = vunpack.c.l.b16 %v1031
        %v1065 = vunpack.c.l.b16 %v1032
        %v1066 = vunpack.c.l.b16 %v1033
        %v1067 = vunpack.c.l.b16 %v1034
        %v1068 = vunpack.c.l.b16 %v1035
        %v1069 = vunpack.c.l.b16 %v1036
        %v1070 = vunpack.c.l.b16 %v1037
        %v1071 = vpack.c.b16 %v1056, %v1055
        %v1072 = vpack.c.b16 %v1058, %v1057
        %v1073 = vpack.c.b16 %v1060, %v1059
        %v1074 = vpack.c.b16 %v1062, %v1061
        %v1075 = vpack.c.b16 %v1064, %v1063
        %v1076 = vpack.c.b16 %v1066, %v1065
        %v1077 = vpack.c.b16 %v1068, %v1067
        %v1078 = vpack.c.b16 %v1070, %v1069
        %1087 = vmatprep.subr.bf16.mxu0 0
        %1088 = vmatpush1.bf16.msra.mxu0 %v1071
        %1089 = vmatprep.subr.bf16.mxu0 0
        %1090 = vmatpush1.bf16.msra.mxu0 %v1072
        %1091 = vmatprep.subr.bf16.mxu0 0
        %1092 = vmatpush1.bf16.msra.mxu0 %v1073
        %1093 = vmatprep.subr.bf16.mxu0 0
        %1094 = vmatpush1.bf16.msra.mxu0 %v1074
        %1095 = vmatprep.subr.bf16.mxu0 0
        %1096 = vmatpush1.bf16.msra.mxu0 %v1075
        %1097 = vmatprep.subr.bf16.mxu0 0
        %1098 = vmatpush1.bf16.msra.mxu0 %v1076
        %1099 = vmatprep.subr.bf16.mxu0 0
        %1100 = vmatpush1.bf16.msra.mxu0 %v1077
        %1101 = vmatprep.subr.bf16.mxu0 0
        %1102 = vmatpush1.bf16.msra.mxu0 %v1078
        %1103 = vmatprep.subr.bf16.mxu0 0
        %1104 = vmatpush1.bf16.msra.mxu0 0
        %1105 = vmatprep.subr.bf16.mxu0 0
        %1106 = vmatpush1.bf16.msra.mxu0 0
        %1107 = vmatprep.subr.bf16.mxu0 0
        %1108 = vmatpush1.bf16.msra.mxu0 0
        %1109 = vmatprep.subr.bf16.mxu0 0
        %1110 = vmatpush1.bf16.msra.mxu0 0
        %1111 = vmatprep.subr.bf16.mxu0 0
        %1112 = vmatpush1.bf16.msra.mxu0 0
        %1113 = vmatprep.subr.bf16.mxu0 0
        %1114 = vmatpush1.bf16.msra.mxu0 0
        %1115 = vmatprep.subr.bf16.mxu0 0
        %1116 = vmatpush1.bf16.msra.mxu0 0
        %1117 = vmatprep.subr.bf16.mxu0 0
        %1118 = vmatpush1.bf16.msra.mxu0 0
        %1119 = vmatprep.mubr.bf16.mxu0 0
        %1120 = vmatmul.mubr.bf16.gmra.mrb[0].mxu0 %v1021
        %v1121 = vpop.f32.mrb[0].mxu0
        %v1122 = vadd.f32 %v1038, %v1121
        %v1123 = vpop.f32.mrb[0].mxu0
        %v1124 = vpop.f32.mrb[0].mxu0
        %v1125 = vpop.f32.mrb[0].mxu0
        %1126 = vdwg.mxu0
        %s1127 = smul.u32 %s28, 128
        %s1128 = sshra.s32 %s1127, 7
        %s1129 = sand.u32 %s1127, 127
        %s1130 = scalar_lea.vmem %s478, %s1128
        %v1131 = vlaneseq
        %vm1132 = vcmp.ge.s32.totalorder %v1131, 0
        %vm1133 = vcmp.lt.s32.totalorder %v1131, 128
        %vm1134 = vmand %vm1132, %vm1133
        %1135 = vst.msk [vmem:[%s1130] sm:$0x1] %vm1134, %v1122
        %v1136 = vld [vmem:[#allocation3] sm:$0x1]
        %vm1137 = vcmask 1040384
        %v1138 = vsel %vm1137, %v1122, -inf
        %1139 = vmax.xlane.f32.xlu0 %v1138
        %v1140 = vpop.xlane.xlu0 %1139
        %v1141 = vmax.f32 %v1136, %v1140
        %v1142 = vld [vmem:[#allocation4] sm:$0x1]
        %v1143 = vsub.f32 %v1136, %v1141
        %v1144 = vmul.f32 %v1143, 1.442695
        %v1145 = vpow.pop %v1144
        %v1146 = vmul.f32 %v1142, %v1145
        %1148 = vset.pattern.permute.xlu0 0
        %1149 = vperm.xlu0 %1148, %v1141
        %v1150 = vpop.permute.xlu0 %1149
        %v1152 = vlaneseq
        %v1153 = vshrl.u32 %v1152, 7
        %v1154 = vsub.s32 0, %v1153
        %v1155 = vrot.slane %v1150, %v1154
        %v1156 = vsub.f32 %v1122, %v1155
        %v1157 = vmul.f32 %v1156, 1.442695
        %v1158 = vpow.pop %v1157
        %v1159 = vsel %vm1137, %v1158, 0.0
        %1160 = vadd.xlane.f32.xlu0 %v1159
        %v1161 = vpop.xlane.xlu0 %1160
        %v1162 = vadd.f32 %v1146, %v1161
        %vm1163 = vcmask 0
        %1164 = vst.msk [vmem:[#allocation4] sm:$0x1] %vm1163, %v1162
        %1165 = vst.msk [vmem:[#allocation3] sm:$0x1] %vm1163, %v1141
        %p1166 = scmp.eq.s32.totalorder %s28, 3
        // Predicated region
        $region102: #{decoder_rnn_decode.1} parent=88 // pred_check
          %p1167 = pneg %p1166
        $region103: #{decoder_rnn_decode.1} parent=88 // pred_check_branch
          %1169 = sbr.rel (%p1167) target = $region105
        $region104: #{decoder_rnn_decode.1} parent=88 // pred_region
          %v1170 = vld [vmem:[#allocation3] sm:$0x1]
          %v1171 = vld [vmem:[#allocation4] sm:$0x1]
          %v1172 = vlog2.pop %v1171
          %v1173 = vmul.f32 %v1172, 0.6931472
          %v1174 = vadd.f32 %v1170, %v1173
          %v1175 = vld [vmem:[%s478] sm:$0xf]
          %1177 = vset.pattern.permute.xlu0 0
          %1178 = vperm.xlu0 %1177, %v1174
          %v1179 = vpop.permute.xlu0 %1178
          %v1181 = vlaneseq
          %v1182 = vshrl.u32 %v1181, 7
          %v1183 = vsub.s32 0, %v1182
          %v1184 = vrot.slane %v1179, %v1183
          %v1185 = vsub.f32 %v1175, %v1184
          %vm1186 = vcmp.lt.s32.totalorder %v1131, 512
          %vm1187 = vmand %vm1132, %vm1186
          %1188 = vst.msk [vmem:[%s478] sm:$0xf] %vm1187, %v1185
        $region105: #{decoder_rnn_decode.1} parent=88 // pred_fallthru
          _
        %p1189 = scmp.eq.s32.totalorder %s27, 0
        %p1190 = pnand %p1189, %p1166
        %p1191 = pneg %p1190
        // Predicated region
        $region106: #{decoder_rnn_decode.1} parent=88 // pred_check
          _
        $region107: #{decoder_rnn_decode.1} parent=88 // pred_check_branch
          %1193 = sbr.rel (%p1190) target = $region109
        $region108: #{decoder_rnn_decode.1} parent=88 // pred_region
          %v1194 = vld [vmem:[#allocation2] sm:$0x1]
          %1195 = vst [vmem:[%s10] sm:$0x1] %v1194
        $region109: #{decoder_rnn_decode.1} parent=88 // pred_fallthru
          _
        %p1196 = scmp.lt.s32.totalorder %s27, 0
        %s1197 = scalar_select %p1196, %s27, 0
        %s1198 = smul.addr %s1197, 4
        %s1199 = scalar_lea.vmem %s9, %s1198
        // Predicated region
        $region110: #{decoder_rnn_decode.1} parent=88 // pred_check
          %p1200 = pneg %p238
        $region111: #{decoder_rnn_decode.1} parent=88 // pred_check_branch
          %1202 = sbr.rel (%p1200) target = $region113
        $region112: #{decoder_rnn_decode.1} parent=88 // pred_region
          _
        $region113: #{decoder_rnn_decode.1} parent=88 // pred_fallthru
          _
        // Predicated region
        $region114: #{decoder_rnn_decode.1} parent=88 // pred_check
          %p1203 = pneg %p259
        $region115: #{decoder_rnn_decode.1} parent=88 // pred_check_branch
          %1205 = sbr.rel (%p1203) target = $region117
        $region116: #{decoder_rnn_decode.1} parent=88 // pred_region
          _
        $region117: #{decoder_rnn_decode.1} parent=88 // pred_fallthru
          _
        // Predicated region
        $region118: #{decoder_rnn_decode.1} parent=88 // pred_check
          %p1206 = pneg %p238
        $region119: #{decoder_rnn_decode.1} parent=88 // pred_check_branch
          %1208 = sbr.rel (%p1206) target = $region121
        $region120: #{decoder_rnn_decode.1} parent=88 // pred_region
          %p1209 = scmp.lt.s32.totalorder %s27, 0
          %s1210 = scalar_select %p1209, %s27, 0
          %s1211 = smul.addr %s1210, 4
          %s1212 = scalar_lea.vmem %s9, %s1211
        $region121: #{decoder_rnn_decode.1} parent=88 // pred_fallthru
          _
        // Predicated region
        $region122: #{decoder_rnn_decode.1} parent=88 // pred_check
          %p1213 = pneg %p259
        $region123: #{decoder_rnn_decode.1} parent=88 // pred_check_branch
          %1215 = sbr.rel (%p1213) target = $region125
        $region124: #{decoder_rnn_decode.1} parent=88 // pred_region
          _
        $region125: #{decoder_rnn_decode.1} parent=88 // pred_fallthru
          _
      $region89: #{decoder_rnn_decode.1} parent=5 // pred_fallthru
        _
      %p1216 = scmp.le.s32.totalorder 2, %s18
      // Predicated region
      $region126: #{decoder_rnn_decode.1} parent=5 // pred_check
        %p1217 = pneg %p1216
      $region127: #{decoder_rnn_decode.1} parent=5 // pred_check_branch
        %1219 = sbr.rel (%p1217) target = $region129
      $region128: #{decoder_rnn_decode.1} parent=5 // pred_region
        %s1220 = ssub.s32 %s18, 2
      $region129: #{decoder_rnn_decode.1} parent=5 // pred_fallthru
        _
    $region6: #{decoder_rnn_decode.1} parent=1 // loop_footer
      %s22 = sadd.s32 1, %s18
    $region7: #{decoder_rnn_decode.1} parent=1 // loop_footer_branch
      %17 = sbr.rel target = $region3
    $region8: #{decoder_rnn_decode.1} parent=1 // loop_exit
      _

</llo_original>
